<compile_context>
chip_gen: v5e
topology: v5e:2x2
jax: 0.10.0
libtpu: 0.0.40
codegen_flags: <defaults>
</compile_context>

<pallas_src>
import math

import numpy as np
import jax
import jax.numpy as jnp
from jax.experimental import pallas as pl
from jax.experimental.pallas import tpu as pltpu


# ----------------------------- Pallas kernel --------------------------------

def make_ppm_kernel(nb):
    """Kernel over one output lane-tile; bins unrolled in-kernel."""

    def kernel(*refs):
        x_ref = refs[0]                      # (N*C, HW)          compute dtype (bf16)
        pk_refs = refs[1:1 + nb]             # k: (HW, HWp_k)     compute dtype
        uk_refs = refs[1 + nb:1 + 2 * nb]    # k: (HWp_k, LANE)   compute dtype
        w_ref = refs[1 + 2 * nb]             # (nb, N*Co, N*C)    compute dtype
        b_ref = refs[2 + 2 * nb]             # (nb, N*Co, 1)      f32
        o_ref = refs[3 + 2 * nb]             # (N*Co, LANE)       f32

        x = x_ref[...]
        cdt = x.dtype
        acc = jnp.zeros(o_ref.shape, jnp.float32)

        for k in range(nb):                                   # unrolled at trace time
            # pool (spatial on lanes): (N*C, HW) @ (HW, HWp_k) -> (N*C, HWp_k)
            pooled = jnp.dot(x, pk_refs[k][...],
                             preferred_element_type=jnp.float32)
            # 1x1 conv (+ folded BN) as block-diag weight: (N*Co, N*C) @ (N*C, HWp_k)
            z = jnp.dot(w_ref[k], pooled.astype(cdt),
                        preferred_element_type=jnp.float32)
            # f32 epilogue: bias + ReLU (padded pooled columns give relu(bias), but the
            # matching Uk^T rows are zero so they cannot leak into the sum).
            y = jnp.maximum(z + b_ref[k], 0.0)
            # bilinear upsample restricted to this output lane tile, accumulate in f32
            acc = acc + jnp.dot(y.astype(cdt), uk_refs[k][...],
                                preferred_element_type=jnp.float32)

        o_ref[...] = acc.astype(o_ref.dtype)

    return kernel


# --------------------------- operator construction --------------------------

def avg_pool_matrix(size, ratio):
    """Linear operator of nn.AvgPool2d(ratio, ceil_mode=True) along one axis."""
    out = math.ceil(size / ratio)
    m = np.zeros((out, size), np.float32)
    for p in range(out):
        start = p * ratio
        end = min(start + ratio, size)
        # ceil_mode windows overhanging the boundary average over valid elems
        m[p, start:end] = 1.0 / (end - start)
    return m


def bilinear_matrix(out_size, in_size):
    """Linear operator of bilinear resize (align_corners=False) along one axis."""
    m = np.zeros((out_size, in_size), np.float32)
    if in_size == 1:
        m[:, 0] = 1.0
        return m
    scale = in_size / out_size
    for o in range(out_size):
        src = max((o + 0.5) * scale - 0.5, 0.0)
        i0 = min(int(np.floor(src)), in_size - 1)
        i1 = min(i0 + 1, in_size - 1)
        lam = src - i0
        m[o, i0] += 1.0 - lam
        m[o, i1] += lam
    return m


def build_branch_operators(H, W, bins, image_size, pad_multiple=8):
    """Per-bin TRANSPOSED spatial operators Pk^T: (HW, HWp), Uk^T: (HWp, HW).

    Ragged per-bin pooled size HWp, only rounded up to a multiple of `pad_multiple`
    (sublane alignment).  Padded pooled slots are zero columns of Pk^T and zero rows
    of Uk^T, so relu(bias) in those slots never reaches the accumulation.
    """
    Ho, Wo = image_size
    assert (Ho, Wo) == (H, W), "this script keeps output spatial == input spatial"
    HW = H * W
    pkT_list, ukT_list = [], []
    for r in bins:
        ph = avg_pool_matrix(H, r)                 # (Hp, H)
        pw = avg_pool_matrix(W, r)                 # (Wp, W)
        ah = bilinear_matrix(Ho, ph.shape[0])      # (H, Hp)
        aw = bilinear_matrix(Wo, pw.shape[0])      # (W, Wp)
        pk = np.kron(ph, pw)                       # (HWp, HW), row-major spatial
        uk = np.kron(ah, aw)                       # (HW, HWp)
        hwp = pk.shape[0]
        hwp_pad = max(pad_multiple, ((hwp + pad_multiple - 1) // pad_multiple) * pad_multiple)
        pkT = np.zeros((HW, hwp_pad), np.float32)
        pkT[:, :hwp] = pk.T
        ukT = np.zeros((hwp_pad, HW), np.float32)
        ukT[:hwp, :] = uk.T
        pkT_list.append(pkT)
        ukT_list.append(ukT)
    return pkT_list, ukT_list


def init_branch_params(key, nb, c_in, c_out):
    """Deterministic Conv2d(1x1, no bias) + BatchNorm2d params, BN folded (eval)."""
    ks = jax.random.split(key, nb)
    w_all, b_all = [], []
    eps = 1e-5
    for i in range(nb):
        kw, kg, kb, km, kv = jax.random.split(ks[i], 5)
        w = jax.random.normal(kw, (c_out, c_in), jnp.float32) * 0.1   # Conv2d (Co,C,1,1)
        gamma = 1.0 + 0.1 * jax.random.normal(kg, (c_out,), jnp.float32)
        beta = 0.1 * jax.random.normal(kb, (c_out,), jnp.float32)
        r_mean = 0.1 * jax.random.normal(km, (c_out,), jnp.float32)
        r_var = 1.0 + 0.1 * jax.random.uniform(kv, (c_out,), jnp.float32)
        inv_std = gamma / jnp.sqrt(r_var + eps)
        w_all.append(w * inv_std[:, None])          # (Co, C) folded weight
        b_all.append(beta - r_mean * inv_std)       # (Co,)   folded bias
    return jnp.stack(w_all), jnp.stack(b_all)


# ------------------------------- wrapper -------------------------------------

def flex_ppm_sum(x_nchw, pkT_list, ukT_list, w_all, b_all,
                 *, compute_dtype=jnp.bfloat16, lane_tile=128):
    N, C, H, W = x_nchw.shape
    nb = len(pkT_list)
    HW = H * W
    Co = w_all.shape[1]
    NC, NCo = N * C, N * Co

    if HW % lane_tile != 0:
        lane_tile = HW
    n_tiles = HW // lane_tile

    # NCHW -> (N*C, HW): batch on sublanes, spatial on lanes.  Free reshape.
    x2d = x_nchw.reshape(NC, HW).astype(compute_dtype)

    # bf16 matmul operands (f32 accumulation + f32 epilogue inside the kernel).
    pk_ops = [jnp.asarray(p, compute_dtype) for p in pkT_list]
    uk_ops = [jnp.asarray(u, compute_dtype) for u in ukT_list]

    # Fold batch into a block-diagonal 1x1-conv weight so the conv stays a single
    # sublane/lane-contiguous matmul in the (N*Co, HWp) layout (costs N x extra
    # tiny-matmul FLOPs, avoids any in-kernel relayout).
    eye = jnp.eye(N, dtype=jnp.float32)
    w_blk = jnp.stack([jnp.kron(eye, w_all[k]) for k in range(nb)]).astype(compute_dtype)
    b_blk = jnp.stack([jnp.tile(b_all[k], N)[:, None] for k in range(nb)])   # f32

    # Inputs with constant index_maps stay VMEM-resident across the (tiny) grid.
    in_specs = [pl.BlockSpec((NC, HW), lambda t: (0, 0))]
    for p in pk_ops:
        in_specs.append(pl.BlockSpec(p.shape, lambda t: (0, 0)))
    for u in uk_ops:
        in_specs.append(pl.BlockSpec((u.shape[0], lane_tile), lambda t: (0, t)))
    in_specs.append(pl.BlockSpec((nb, NCo, NC), lambda t: (0, 0, 0)))
    in_specs.append(pl.BlockSpec((nb, NCo, 1), lambda t: (0, 0, 0)))

    out = pl.pallas_call(
        make_ppm_kernel(nb),
        out_shape=jax.ShapeDtypeStruct((NCo, HW), jnp.float32),
        grid_spec=pltpu.PrefetchScalarGridSpec(
            num_scalar_prefetch=0,
            grid=(n_tiles,),                     # lane-tile axis (even -> 2 TCs on v7x)
            in_specs=in_specs,
            out_specs=pl.BlockSpec((NCo, lane_tile), lambda t: (0, t)),
        ),
        compiler_params=pltpu.CompilerParams(
            dimension_semantics=("parallel",)),
    )(x2d, *pk_ops, *uk_ops, w_blk, b_blk)

    # (N*Co, HW) -> NCHW, free reshape.
    return out.reshape(N, Co, H, W)


# --------------------------------- reference ---------------------------------

def reference(x_nchw, pkT_list, ukT_list, w_all, b_all, compute_dtype=jnp.bfloat16):
    """Plain-JAX reference with the same numerics (bf16 operands, f32 accumulation)."""
    N, C, H, W = x_nchw.shape
    Co = w_all.shape[1]
    xt = x_nchw.reshape(N, C, H * W).astype(compute_dtype)
    acc = jnp.zeros((N, Co, H * W), jnp.float32)
    for k in range(len(pkT_list)):
        pkT = jnp.asarray(pkT_list[k], compute_dtype)
        ukT = jnp.asarray(ukT_list[k], compute_dtype)
        wk = w_all[k].astype(compute_dtype)
        pooled = jnp.einsum('nch,hp->ncp', xt, pkT,
                            preferred_element_type=jnp.float32)
        z = jnp.einsum('oc,ncp->nop', wk, pooled.astype(compute_dtype),
                       preferred_element_type=jnp.float32)
        y = jnp.maximum(z + b_all[k][None, :, None], 0.0)
        acc = acc + jnp.einsum('nop,ph->noh', y.astype(compute_dtype), ukT,
                               preferred_element_type=jnp.float32)
    return acc.reshape(N, Co, H, W)


# --------------------------------- main --------------------------------------

if __name__ == "__main__":
    N, C_in, C_out = 2, 4, 8
    H = W = 16
    bins = (1, 2, 4, 8)
    image_size = (H, W)

    key = jax.random.PRNGKey(0)
    kx, kp = jax.random.split(key)
    x = jax.random.normal(kx, (N, C_in, H, W), jnp.float32)   # NCHW like PyTorch

    pkT_np, ukT_np = build_branch_operators(H, W, bins, image_size)
    pkT_list = [jnp.asarray(p) for p in pkT_np]
    ukT_list = [jnp.asarray(u) for u in ukT_np]
    w_all, b_all = init_branch_params(kp, len(bins), C_in, C_out)

    out = flex_ppm_sum(x, pkT_list, ukT_list, w_all, b_all)
    out = jax.block_until_ready(out)

    ref = jax.block_until_ready(
        reference(x, pkT_list, ukT_list, w_all, b_all, compute_dtype=jnp.bfloat16))
    assert out.shape == (N, C_out, H, W)
    np.testing.assert_allclose(np.asarray(out), np.asarray(ref), rtol=1e-2, atol=1e-2)

    print("KERNEL_OK")
</pallas_src>

<mosaic_0001>
module attributes {stable_mosaic.version = 11 : i64} {
  func.func @kernel(%arg0: i32, %arg1: memref<8x256xbf16, #tpu.memory_space<vmem>>, %arg2: memref<256x256xbf16, #tpu.memory_space<vmem>>, %arg3: memref<256x64xbf16, #tpu.memory_space<vmem>>, %arg4: memref<256x16xbf16, #tpu.memory_space<vmem>>, %arg5: memref<256x8xbf16, #tpu.memory_space<vmem>>, %arg6: memref<256x128xbf16, #tpu.memory_space<vmem>>, %arg7: memref<64x128xbf16, #tpu.memory_space<vmem>>, %arg8: memref<16x128xbf16, #tpu.memory_space<vmem>>, %arg9: memref<8x128xbf16, #tpu.memory_space<vmem>>, %arg10: memref<4x16x8xbf16, #tpu.memory_space<vmem>>, %arg11: memref<4x16x1xf32, #tpu.memory_space<vmem>>, %arg12: memref<16x128xf32, #tpu.memory_space<vmem>>) attributes {dimension_semantics = [#tpu.dimension_semantics<parallel>], iteration_bounds = array<i64: 2>, scalar_prefetch = 0 : i64, scratch_operands = 0 : i64, tpu.core_type = #tpu.core_type<tc>, window_params = [{pipeline_mode = #tpu.pipeline_mode<synchronous>, transform_indices = @transform_0, window_bounds = array<i64: 8, 256>}, {pipeline_mode = #tpu.pipeline_mode<synchronous>, transform_indices = @transform_1, window_bounds = array<i64: 256, 256>}, {pipeline_mode = #tpu.pipeline_mode<synchronous>, transform_indices = @transform_2, window_bounds = array<i64: 256, 64>}, {pipeline_mode = #tpu.pipeline_mode<synchronous>, transform_indices = @transform_3, window_bounds = array<i64: 256, 16>}, {pipeline_mode = #tpu.pipeline_mode<synchronous>, transform_indices = @transform_4, window_bounds = array<i64: 256, 8>}, {transform_indices = @transform_5, window_bounds = array<i64: 256, 128>}, {transform_indices = @transform_6, window_bounds = array<i64: 64, 128>}, {transform_indices = @transform_7, window_bounds = array<i64: 16, 128>}, {transform_indices = @transform_8, window_bounds = array<i64: 8, 128>}, {pipeline_mode = #tpu.pipeline_mode<synchronous>, transform_indices = @transform_9, window_bounds = array<i64: 4, 16, 8>}, {pipeline_mode = #tpu.pipeline_mode<synchronous>, transform_indices = @transform_10, window_bounds = array<i64: 4, 16, 1>}, {transform_indices = @transform_11, window_bounds = array<i64: 16, 128>}]} {
    %c0 = arith.constant 0 : index
    %c0_0 = arith.constant 0 : index
    %0 = vector.load %arg1[%c0, %c0_0] : memref<8x256xbf16, #tpu.memory_space<vmem>>, vector<8x256xbf16>
    %cst = arith.constant 0.000000e+00 : f32
    %1 = vector.broadcast %cst : f32 to vector<16x128xf32>
    %c0_1 = arith.constant 0 : index
    %c0_2 = arith.constant 0 : index
    %2 = vector.load %arg2[%c0_1, %c0_2] : memref<256x256xbf16, #tpu.memory_space<vmem>>, vector<256x256xbf16>
    %cst_3 = arith.constant dense<0.000000e+00> : vector<8x256xf32>
    %3 = tpu.matmul %0, %2, %cst_3 {dimension_numbers = #tpu.dot_dimension_numbers<[1], [0], [0], [1], [0, 0, 1, 1], [], []>} : vector<8x256xbf16>, vector<256x256xbf16>, vector<8x256xf32> -> vector<8x256xf32>
    %c0_4 = arith.constant 0 : index
    %c0_5 = arith.constant 0 : index
    %c0_6 = arith.constant 0 : index
    %4 = vector.load %arg10[%c0_4, %c0_5, %c0_6] : memref<4x16x8xbf16, #tpu.memory_space<vmem>>, vector<1x16x8xbf16>
    %5 = vector.shape_cast %4 : vector<1x16x8xbf16> to vector<16x8xbf16>
    %6 = arith.truncf %3 : vector<8x256xf32> to vector<8x256xbf16>
    %cst_7 = arith.constant dense<0.000000e+00> : vector<16x256xf32>
    %7 = tpu.matmul %5, %6, %cst_7 {dimension_numbers = #tpu.dot_dimension_numbers<[1], [0], [0], [1], [0, 0, 1, 1], [], []>} : vector<16x8xbf16>, vector<8x256xbf16>, vector<16x256xf32> -> vector<16x256xf32>
    %c0_8 = arith.constant 0 : index
    %c0_9 = arith.constant 0 : index
    %c0_10 = arith.constant 0 : index
    %8 = vector.load %arg11[%c0_8, %c0_9, %c0_10] : memref<4x16x1xf32, #tpu.memory_space<vmem>>, vector<1x16x1xf32>
    %9 = vector.shape_cast %8 : vector<1x16x1xf32> to vector<16x1xf32>
    %10 = vector.broadcast %9 : vector<16x1xf32> to vector<16x256xf32>
    %11 = arith.addf %7, %10 : vector<16x256xf32>
    %cst_11 = arith.constant 0.000000e+00 : f32
    %12 = vector.broadcast %cst_11 : f32 to vector<16x256xf32>
    %13 = arith.maximumf %11, %12 : vector<16x256xf32>
    %14 = arith.truncf %13 : vector<16x256xf32> to vector<16x256xbf16>
    %c0_12 = arith.constant 0 : index
    %c0_13 = arith.constant 0 : index
    %15 = vector.load %arg6[%c0_12, %c0_13] : memref<256x128xbf16, #tpu.memory_space<vmem>>, vector<256x128xbf16>
    %cst_14 = arith.constant dense<0.000000e+00> : vector<16x128xf32>
    %16 = tpu.matmul %14, %15, %cst_14 {dimension_numbers = #tpu.dot_dimension_numbers<[1], [0], [0], [1], [0, 0, 1, 1], [], []>} : vector<16x256xbf16>, vector<256x128xbf16>, vector<16x128xf32> -> vector<16x128xf32>
    %17 = arith.addf %1, %16 : vector<16x128xf32>
    %c0_15 = arith.constant 0 : index
    %c0_16 = arith.constant 0 : index
    %18 = vector.load %arg3[%c0_15, %c0_16] : memref<256x64xbf16, #tpu.memory_space<vmem>>, vector<256x64xbf16>
    %cst_17 = arith.constant dense<0.000000e+00> : vector<8x64xf32>
    %19 = tpu.matmul %0, %18, %cst_17 {dimension_numbers = #tpu.dot_dimension_numbers<[1], [0], [0], [1], [0, 0, 1, 1], [], []>} : vector<8x256xbf16>, vector<256x64xbf16>, vector<8x64xf32> -> vector<8x64xf32>
    %c1 = arith.constant 1 : index
    %c0_18 = arith.constant 0 : index
    %c0_19 = arith.constant 0 : index
    %20 = vector.load %arg10[%c1, %c0_18, %c0_19] : memref<4x16x8xbf16, #tpu.memory_space<vmem>>, vector<1x16x8xbf16>
    %21 = vector.shape_cast %20 : vector<1x16x8xbf16> to vector<16x8xbf16>
    %22 = arith.truncf %19 : vector<8x64xf32> to vector<8x64xbf16>
    %cst_20 = arith.constant dense<0.000000e+00> : vector<16x64xf32>
    %23 = tpu.matmul %21, %22, %cst_20 {dimension_numbers = #tpu.dot_dimension_numbers<[1], [0], [0], [1], [0, 0, 1, 1], [], []>} : vector<16x8xbf16>, vector<8x64xbf16>, vector<16x64xf32> -> vector<16x64xf32>
    %c1_21 = arith.constant 1 : index
    %c0_22 = arith.constant 0 : index
    %c0_23 = arith.constant 0 : index
    %24 = vector.load %arg11[%c1_21, %c0_22, %c0_23] : memref<4x16x1xf32, #tpu.memory_space<vmem>>, vector<1x16x1xf32>
    %25 = vector.shape_cast %24 : vector<1x16x1xf32> to vector<16x1xf32>
    %26 = vector.broadcast %25 : vector<16x1xf32> to vector<16x64xf32>
    %27 = arith.addf %23, %26 : vector<16x64xf32>
    %cst_24 = arith.constant 0.000000e+00 : f32
    %28 = vector.broadcast %cst_24 : f32 to vector<16x64xf32>
    %29 = arith.maximumf %27, %28 : vector<16x64xf32>
    %30 = arith.truncf %29 : vector<16x64xf32> to vector<16x64xbf16>
    %c0_25 = arith.constant 0 : index
    %c0_26 = arith.constant 0 : index
    %31 = vector.load %arg7[%c0_25, %c0_26] : memref<64x128xbf16, #tpu.memory_space<vmem>>, vector<64x128xbf16>
    %cst_27 = arith.constant dense<0.000000e+00> : vector<16x128xf32>
    %32 = tpu.matmul %30, %31, %cst_27 {dimension_numbers = #tpu.dot_dimension_numbers<[1], [0], [0], [1], [0, 0, 1, 1], [], []>} : vector<16x64xbf16>, vector<64x128xbf16>, vector<16x128xf32> -> vector<16x128xf32>
    %33 = arith.addf %17, %32 : vector<16x128xf32>
    %c0_28 = arith.constant 0 : index
    %c0_29 = arith.constant 0 : index
    %34 = vector.load %arg4[%c0_28, %c0_29] : memref<256x16xbf16, #tpu.memory_space<vmem>>, vector<256x16xbf16>
    %cst_30 = arith.constant dense<0.000000e+00> : vector<8x16xf32>
    %35 = tpu.matmul %0, %34, %cst_30 {dimension_numbers = #tpu.dot_dimension_numbers<[1], [0], [0], [1], [0, 0, 1, 1], [], []>} : vector<8x256xbf16>, vector<256x16xbf16>, vector<8x16xf32> -> vector<8x16xf32>
    %c2 = arith.constant 2 : index
    %c0_31 = arith.constant 0 : index
    %c0_32 = arith.constant 0 : index
    %36 = vector.load %arg10[%c2, %c0_31, %c0_32] : memref<4x16x8xbf16, #tpu.memory_space<vmem>>, vector<1x16x8xbf16>
    %37 = vector.shape_cast %36 : vector<1x16x8xbf16> to vector<16x8xbf16>
    %38 = arith.truncf %35 : vector<8x16xf32> to vector<8x16xbf16>
    %cst_33 = arith.constant dense<0.000000e+00> : vector<16x16xf32>
    %39 = tpu.matmul %37, %38, %cst_33 {dimension_numbers = #tpu.dot_dimension_numbers<[1], [0], [0], [1], [0, 0, 1, 1], [], []>} : vector<16x8xbf16>, vector<8x16xbf16>, vector<16x16xf32> -> vector<16x16xf32>
    %c2_34 = arith.constant 2 : index
    %c0_35 = arith.constant 0 : index
    %c0_36 = arith.constant 0 : index
    %40 = vector.load %arg11[%c2_34, %c0_35, %c0_36] : memref<4x16x1xf32, #tpu.memory_space<vmem>>, vector<1x16x1xf32>
    %41 = vector.shape_cast %40 : vector<1x16x1xf32> to vector<16x1xf32>
    %42 = vector.broadcast %41 : vector<16x1xf32> to vector<16x16xf32>
    %43 = arith.addf %39, %42 : vector<16x16xf32>
    %cst_37 = arith.constant 0.000000e+00 : f32
    %44 = vector.broadcast %cst_37 : f32 to vector<16x16xf32>
    %45 = arith.maximumf %43, %44 : vector<16x16xf32>
    %46 = arith.truncf %45 : vector<16x16xf32> to vector<16x16xbf16>
    %c0_38 = arith.constant 0 : index
    %c0_39 = arith.constant 0 : index
    %47 = vector.load %arg8[%c0_38, %c0_39] : memref<16x128xbf16, #tpu.memory_space<vmem>>, vector<16x128xbf16>
    %cst_40 = arith.constant dense<0.000000e+00> : vector<16x128xf32>
    %48 = tpu.matmul %46, %47, %cst_40 {dimension_numbers = #tpu.dot_dimension_numbers<[1], [0], [0], [1], [0, 0, 1, 1], [], []>} : vector<16x16xbf16>, vector<16x128xbf16>, vector<16x128xf32> -> vector<16x128xf32>
    %49 = arith.addf %33, %48 : vector<16x128xf32>
    %c0_41 = arith.constant 0 : index
    %c0_42 = arith.constant 0 : index
    %50 = vector.load %arg5[%c0_41, %c0_42] : memref<256x8xbf16, #tpu.memory_space<vmem>>, vector<256x8xbf16>
    %cst_43 = arith.constant dense<0.000000e+00> : vector<8x8xf32>
    %51 = tpu.matmul %0, %50, %cst_43 {dimension_numbers = #tpu.dot_dimension_numbers<[1], [0], [0], [1], [0, 0, 1, 1], [], []>} : vector<8x256xbf16>, vector<256x8xbf16>, vector<8x8xf32> -> vector<8x8xf32>
    %c3 = arith.constant 3 : index
    %c0_44 = arith.constant 0 : index
    %c0_45 = arith.constant 0 : index
    %52 = vector.load %arg10[%c3, %c0_44, %c0_45] : memref<4x16x8xbf16, #tpu.memory_space<vmem>>, vector<1x16x8xbf16>
    %53 = vector.shape_cast %52 : vector<1x16x8xbf16> to vector<16x8xbf16>
    %54 = arith.truncf %51 : vector<8x8xf32> to vector<8x8xbf16>
    %cst_46 = arith.constant dense<0.000000e+00> : vector<16x8xf32>
    %55 = tpu.matmul %53, %54, %cst_46 {dimension_numbers = #tpu.dot_dimension_numbers<[1], [0], [0], [1], [0, 0, 1, 1], [], []>} : vector<16x8xbf16>, vector<8x8xbf16>, vector<16x8xf32> -> vector<16x8xf32>
    %c3_47 = arith.constant 3 : index
    %c0_48 = arith.constant 0 : index
    %c0_49 = arith.constant 0 : index
    %56 = vector.load %arg11[%c3_47, %c0_48, %c0_49] : memref<4x16x1xf32, #tpu.memory_space<vmem>>, vector<1x16x1xf32>
    %57 = vector.shape_cast %56 : vector<1x16x1xf32> to vector<16x1xf32>
    %58 = vector.broadcast %57 : vector<16x1xf32> to vector<16x8xf32>
    %59 = arith.addf %55, %58 : vector<16x8xf32>
    %cst_50 = arith.constant 0.000000e+00 : f32
    %60 = vector.broadcast %cst_50 : f32 to vector<16x8xf32>
    %61 = arith.maximumf %59, %60 : vector<16x8xf32>
    %62 = arith.truncf %61 : vector<16x8xf32> to vector<16x8xbf16>
    %c0_51 = arith.constant 0 : index
    %c0_52 = arith.constant 0 : index
    %63 = vector.load %arg9[%c0_51, %c0_52] : memref<8x128xbf16, #tpu.memory_space<vmem>>, vector<8x128xbf16>
    %cst_53 = arith.constant dense<0.000000e+00> : vector<16x128xf32>
    %64 = tpu.matmul %62, %63, %cst_53 {dimension_numbers = #tpu.dot_dimension_numbers<[1], [0], [0], [1], [0, 0, 1, 1], [], []>} : vector<16x8xbf16>, vector<8x128xbf16>, vector<16x128xf32> -> vector<16x128xf32>
    %65 = arith.addf %49, %64 : vector<16x128xf32>
    %c0_54 = arith.constant 0 : index
    %c0_55 = arith.constant 0 : index
    %66 = vector.load %arg12[%c0_54, %c0_55] : memref<16x128xf32, #tpu.memory_space<vmem>>, vector<16x128xf32>
    tpu.vector_store %arg12[%c0_54, %c0_55], %65 {strides = array<i32>} : memref<16x128xf32, #tpu.memory_space<vmem>>, vector<16x128xf32>,
    return
  }
  func.func @transform_0(%arg0: i32) -> (i32, i32) {
    %c0_i32 = arith.constant 0 : i32
    %c0_i32_0 = arith.constant 0 : i32
    %c0_i32_1 = arith.constant 0 : i32
    return %c0_i32, %c0_i32_0 : i32, i32
  }
  func.func @transform_1(%arg0: i32) -> (i32, i32) {
    %c0_i32 = arith.constant 0 : i32
    %c0_i32_0 = arith.constant 0 : i32
    %c0_i32_1 = arith.constant 0 : i32
    return %c0_i32, %c0_i32_0 : i32, i32
  }
  func.func @transform_2(%arg0: i32) -> (i32, i32) {
    %c0_i32 = arith.constant 0 : i32
    %c0_i32_0 = arith.constant 0 : i32
    %c0_i32_1 = arith.constant 0 : i32
    return %c0_i32, %c0_i32_0 : i32, i32
  }
  func.func @transform_3(%arg0: i32) -> (i32, i32) {
    %c0_i32 = arith.constant 0 : i32
    %c0_i32_0 = arith.constant 0 : i32
    %c0_i32_1 = arith.constant 0 : i32
    return %c0_i32, %c0_i32_0 : i32, i32
  }
  func.func @transform_4(%arg0: i32) -> (i32, i32) {
    %c0_i32 = arith.constant 0 : i32
    %c0_i32_0 = arith.constant 0 : i32
    %c0_i32_1 = arith.constant 0 : i32
    return %c0_i32, %c0_i32_0 : i32, i32
  }
  func.func @transform_5(%arg0: i32) -> (i32, i32) {
    %c0_i32 = arith.constant 0 : i32
    %c0_i32_0 = arith.constant 0 : i32
    return %c0_i32, %arg0 : i32, i32
  }
  func.func @transform_6(%arg0: i32) -> (i32, i32) {
    %c0_i32 = arith.constant 0 : i32
    %c0_i32_0 = arith.constant 0 : i32
    return %c0_i32, %arg0 : i32, i32
  }
  func.func @transform_7(%arg0: i32) -> (i32, i32) {
    %c0_i32 = arith.constant 0 : i32
    %c0_i32_0 = arith.constant 0 : i32
    return %c0_i32, %arg0 : i32, i32
  }
  func.func @transform_8(%arg0: i32) -> (i32, i32) {
    %c0_i32 = arith.constant 0 : i32
    %c0_i32_0 = arith.constant 0 : i32
    return %c0_i32, %arg0 : i32, i32
  }
  func.func @transform_9(%arg0: i32) -> (i32, i32, i32) {
    %c0_i32 = arith.constant 0 : i32
    %c0_i32_0 = arith.constant 0 : i32
    %c0_i32_1 = arith.constant 0 : i32
    %c0_i32_2 = arith.constant 0 : i32
    return %c0_i32, %c0_i32_0, %c0_i32_1 : i32, i32, i32
  }
  func.func @transform_10(%arg0: i32) -> (i32, i32, i32) {
    %c0_i32 = arith.constant 0 : i32
    %c0_i32_0 = arith.constant 0 : i32
    %c0_i32_1 = arith.constant 0 : i32
    %c0_i32_2 = arith.constant 0 : i32
    return %c0_i32, %c0_i32_0, %c0_i32_1 : i32, i32, i32
  }
  func.func @transform_11(%arg0: i32) -> (i32, i32) {
    %c0_i32 = arith.constant 0 : i32
    %c0_i32_0 = arith.constant 0 : i32
    return %c0_i32, %arg0 : i32, i32
  }
}

</mosaic_0001>

<llo_original>
// kernel: tpu_custom_call.1
$region0: #{tpu_custom_call.1}
  #allocation0 [shape = 'u32[]', space=smem, size = 0x4, offset = 0x4, fixed_abs, tag = 'smem constant byte address 0x4 - core index']
  #allocation1 [shape = 'u32[72,128]{1,0:T(1,128)}', space=vmem, size = 0x9000, scoped, tag = 'internal scratch']
  %s0 = inlined_call_operand.vmem [shape: bf16[8,256], index: 0, kind: input, shape index: {}]
  %s1 = inlined_call_operand.vmem [shape: bf16[256,256], index: 1, kind: input, shape index: {}]
  %s2 = inlined_call_operand.vmem [shape: bf16[256,64], index: 2, kind: input, shape index: {}]
  %s3 = inlined_call_operand.vmem [shape: bf16[256,16], index: 3, kind: input, shape index: {}]
  %s4 = inlined_call_operand.vmem [shape: bf16[256,8], index: 4, kind: input, shape index: {}]
  %s5 = inlined_call_operand.hbm [shape: bf16[256,256], index: 5, kind: input, shape index: {}]
  %s6 = inlined_call_operand.vmem [shape: bf16[64,256], index: 6, kind: input, shape index: {}]
  %s7 = inlined_call_operand.vmem [shape: bf16[16,256], index: 7, kind: input, shape index: {}]
  %s8 = inlined_call_operand.vmem [shape: bf16[8,256], index: 8, kind: input, shape index: {}]
  %s9 = inlined_call_operand.vmem [shape: bf16[4,16,8], index: 9, kind: input, shape index: {}]
  %s10 = inlined_call_operand.vmem [shape: f32[4,16,1], index: 10, kind: input, shape index: {}]
  %s11 = inlined_call_operand.hbm [shape: f32[16,256], index: 11, kind: output, shape index: {}]
  %s12 = sld [smem:[#allocation0]]
  $region163: #{tpu_custom_call.1} parent=0
    _
  %s14 = ssub.s32 1, %s12
  %s15 = scalar_select 0, %s14, %s12
  $region1: #{tpu_custom_call.1} parent=0
    #allocation2 [shape = 'u8[131072]{0}', space=vmem, size = 0x20000, scoped, tag = 'input window, operand 5']
    #allocation3 [shape = 's32[2]{0}', space=sflag, size = 0x8, scoped, tag = 'scoped memory for tpu_custom_call.1']
    #allocation4 [shape = 's32[2]{0}', space=sflag, size = 0x8, scoped, tag = 'scoped memory for tpu_custom_call.1']
    #allocation5 [shape = 'u8[32768]{0}', space=vmem, size = 0x8000, scoped, tag = 'input window, operand 6']
    #allocation6 [shape = 'u8[8192]{0}', space=vmem, size = 0x2000, scoped, tag = 'input window, operand 7']
    #allocation7 [shape = 'u8[16384]{0}', space=vmem, size = 0x4000, scoped, tag = 'output window, operand 0']
    %16 = vsyncpa [#allocation3], 0
    %s17 = scalar_lea.sflag [#allocation3], 1
    %18 = vsyncpa %s17, 0
    %19 = vsyncpa [#allocation4], 0
    %s20 = scalar_lea.sflag [#allocation4], 1
    %21 = vsyncpa %s20, 0
    loop: start=0, step=1, limit=4
    $region2: #{tpu_custom_call.1} parent=1 // loop_pre_header
      _
    $region3: #{tpu_custom_call.1} parent=1 // loop_header
      %s23 = sphi 0, %s27
      %p24 = scmp.ge.s32.totalorder %s23, 4
      %s31 = sphi 0, %s31
      %s33 = sphi 0, %s31
      %s34 = sphi 0, %s33
      %s48 = sphi 0, %s34
      %s52 = sphi 0, %s52
      %s54 = sphi 0, %s52
      %s55 = sphi 0, %s54
      %s69 = sphi 0, %s55
      %s73 = sphi 0, %s73
      %s75 = sphi 0, %s73
      %s76 = sphi 0, %s75
      %s90 = sphi 0, %s76
      %s94 = sphi 0, %s94
      %s96 = sphi 0, %s94
      %s97 = sphi 0, %s96
      %s111 = sphi 0, %s97
      %s115 = sphi 0, %s115
      %s117 = sphi 0, %s115
      %s118 = sphi 0, %s117
      %s132 = sphi 0, %s118
      %s138 = sphi 0, %s140
      %s141 = sphi 0, %s138
      %s142 = sphi 0, %s141
      %s158 = sphi 0, %s142
      %s164 = sphi 0, %s166
      %s167 = sphi 0, %s164
      %s168 = sphi 0, %s167
      %s184 = sphi 0, %s168
      %s190 = sphi 0, %s192
      %s193 = sphi 0, %s190
      %s194 = sphi 0, %s193
      %s210 = sphi 0, %s194
      %s216 = sphi 0, %s218
      %s219 = sphi 0, %s216
      %s220 = sphi 0, %s219
      %s236 = sphi 0, %s220
      %s240 = sphi 0, %s240
      %s242 = sphi 0, %s240
      %s243 = sphi 0, %s242
      %s257 = sphi 0, %s243
      %s261 = sphi 0, %s261
      %s263 = sphi 0, %s261
      %s264 = sphi 0, %s263
      %s278 = sphi 0, %s264
      %s284 = sphi 0, %s286
      %s287 = sphi 0, %s284
      %s288 = sphi 0, %s287
      %s304 = sphi 0, %s288
    $region4: #{tpu_custom_call.1} parent=1 // loop_header_branch
      %26 = sbr.rel (%p24) target = $region8
    $region5: #{tpu_custom_call.1} parent=1 // loop_body
      %s28 = ssub.s32 %s23, 1
      %s29 = ssub.s32 %s23, 2
      %s30 = sadd.s32 %s23, 1
      %s32 = sadd.s32 %s31, 1
      %p35 = scmp.eq.s32.totalorder %s23, 1
      %p36 = scmp.ne.s32.totalorder %s31, %s33
      %p37 = scmp.eq.s32.totalorder %s23, 0
      %p38 = por %p36, %p37
      %p39 = scmp.ne.s32.totalorder %s31, %s33
      %p40 = scmp.eq.s32.totalorder %s28, 1
      %p41 = por %p39, %p40
      %p42 = scmp.ne.s32.totalorder %s33, %s34
      %p43 = scmp.eq.s32.totalorder %s28, 0
      %p44 = por %p42, %p43
      %p45 = scmp.ne.s32.totalorder %s33, %s34
      %p46 = scmp.eq.s32.totalorder %s29, 1
      %p47 = por %p45, %p46
      %p49 = scmp.ne.s32.totalorder %s34, %s48
      %p50 = scmp.eq.s32.totalorder %s29, 0
      %p51 = por %p49, %p50
      %s53 = sadd.s32 %s52, 1
      %p56 = scmp.eq.s32.totalorder %s23, 1
      %p57 = scmp.ne.s32.totalorder %s52, %s54
      %p58 = scmp.eq.s32.totalorder %s23, 0
      %p59 = por %p57, %p58
      %p60 = scmp.ne.s32.totalorder %s52, %s54
      %p61 = scmp.eq.s32.totalorder %s28, 1
      %p62 = por %p60, %p61
      %p63 = scmp.ne.s32.totalorder %s54, %s55
      %p64 = scmp.eq.s32.totalorder %s28, 0
      %p65 = por %p63, %p64
      %p66 = scmp.ne.s32.totalorder %s54, %s55
      %p67 = scmp.eq.s32.totalorder %s29, 1
      %p68 = por %p66, %p67
      %p70 = scmp.ne.s32.totalorder %s55, %s69
      %p71 = scmp.eq.s32.totalorder %s29, 0
      %p72 = por %p70, %p71
      %s74 = sadd.s32 %s73, 1
      %p77 = scmp.eq.s32.totalorder %s23, 1
      %p78 = scmp.ne.s32.totalorder %s73, %s75
      %p79 = scmp.eq.s32.totalorder %s23, 0
      %p80 = por %p78, %p79
      %p81 = scmp.ne.s32.totalorder %s73, %s75
      %p82 = scmp.eq.s32.totalorder %s28, 1
      %p83 = por %p81, %p82
      %p84 = scmp.ne.s32.totalorder %s75, %s76
      %p85 = scmp.eq.s32.totalorder %s28, 0
      %p86 = por %p84, %p85
      %p87 = scmp.ne.s32.totalorder %s75, %s76
      %p88 = scmp.eq.s32.totalorder %s29, 1
      %p89 = por %p87, %p88
      %p91 = scmp.ne.s32.totalorder %s76, %s90
      %p92 = scmp.eq.s32.totalorder %s29, 0
      %p93 = por %p91, %p92
      %s95 = sadd.s32 %s94, 1
      %p98 = scmp.eq.s32.totalorder %s23, 1
      %p99 = scmp.ne.s32.totalorder %s94, %s96
      %p100 = scmp.eq.s32.totalorder %s23, 0
      %p101 = por %p99, %p100
      %p102 = scmp.ne.s32.totalorder %s94, %s96
      %p103 = scmp.eq.s32.totalorder %s28, 1
      %p104 = por %p102, %p103
      %p105 = scmp.ne.s32.totalorder %s96, %s97
      %p106 = scmp.eq.s32.totalorder %s28, 0
      %p107 = por %p105, %p106
      %p108 = scmp.ne.s32.totalorder %s96, %s97
      %p109 = scmp.eq.s32.totalorder %s29, 1
      %p110 = por %p108, %p109
      %p112 = scmp.ne.s32.totalorder %s97, %s111
      %p113 = scmp.eq.s32.totalorder %s29, 0
      %p114 = por %p112, %p113
      %s116 = sadd.s32 %s115, 1
      %p119 = scmp.eq.s32.totalorder %s23, 1
      %p120 = scmp.ne.s32.totalorder %s115, %s117
      %p121 = scmp.eq.s32.totalorder %s23, 0
      %p122 = por %p120, %p121
      %p123 = scmp.ne.s32.totalorder %s115, %s117
      %p124 = scmp.eq.s32.totalorder %s28, 1
      %p125 = por %p123, %p124
      %p126 = scmp.ne.s32.totalorder %s117, %s118
      %p127 = scmp.eq.s32.totalorder %s28, 0
      %p128 = por %p126, %p127
      %p129 = scmp.ne.s32.totalorder %s117, %s118
      %p130 = scmp.eq.s32.totalorder %s29, 1
      %p131 = por %p129, %p130
      %p133 = scmp.ne.s32.totalorder %s118, %s132
      %p134 = scmp.eq.s32.totalorder %s29, 0
      %p135 = por %p133, %p134
      %s136 = ssub.s32 %s23, %s30
      %p137 = scmp.eq.s32.totalorder %s136, 0
      %s139 = sadd.s32 %s138, 1
      %s140 = scalar_select %p137, %s138, %s139
      %p143 = pneg %p137
      %p144 = scmp.eq.s32.totalorder %s23, 1
      %p145 = por %p143, %p144
      %p146 = scmp.ne.s32.totalorder %s138, %s141
      %p147 = scmp.eq.s32.totalorder %s23, 0
      %p148 = por %p146, %p147
      %p149 = scmp.ne.s32.totalorder %s138, %s141
      %p150 = scmp.eq.s32.totalorder %s28, 1
      %p151 = por %p149, %p150
      %p152 = scmp.ne.s32.totalorder %s141, %s142
      %p153 = scmp.eq.s32.totalorder %s28, 0
      %p154 = por %p152, %p153
      %p155 = scmp.ne.s32.totalorder %s141, %s142
      %p156 = scmp.eq.s32.totalorder %s29, 1
      %p157 = por %p155, %p156
      %p159 = scmp.ne.s32.totalorder %s142, %s158
      %p160 = scmp.eq.s32.totalorder %s29, 0
      %p161 = por %p159, %p160
      %s162 = ssub.s32 %s23, %s30
      %p163 = scmp.eq.s32.totalorder %s162, 0
      %s165 = sadd.s32 %s164, 1
      %s166 = scalar_select %p163, %s164, %s165
      %p169 = pneg %p163
      %p170 = scmp.eq.s32.totalorder %s23, 1
      %p171 = por %p169, %p170
      %p172 = scmp.ne.s32.totalorder %s164, %s167
      %p173 = scmp.eq.s32.totalorder %s23, 0
      %p174 = por %p172, %p173
      %p175 = scmp.ne.s32.totalorder %s164, %s167
      %p176 = scmp.eq.s32.totalorder %s28, 1
      %p177 = por %p175, %p176
      %p178 = scmp.ne.s32.totalorder %s167, %s168
      %p179 = scmp.eq.s32.totalorder %s28, 0
      %p180 = por %p178, %p179
      %p181 = scmp.ne.s32.totalorder %s167, %s168
      %p182 = scmp.eq.s32.totalorder %s29, 1
      %p183 = por %p181, %p182
      %p185 = scmp.ne.s32.totalorder %s168, %s184
      %p186 = scmp.eq.s32.totalorder %s29, 0
      %p187 = por %p185, %p186
      %s188 = ssub.s32 %s23, %s30
      %p189 = scmp.eq.s32.totalorder %s188, 0
      %s191 = sadd.s32 %s190, 1
      %s192 = scalar_select %p189, %s190, %s191
      %p195 = pneg %p189
      %p196 = scmp.eq.s32.totalorder %s23, 1
      %p197 = por %p195, %p196
      %p198 = scmp.ne.s32.totalorder %s190, %s193
      %p199 = scmp.eq.s32.totalorder %s23, 0
      %p200 = por %p198, %p199
      %p201 = scmp.ne.s32.totalorder %s190, %s193
      %p202 = scmp.eq.s32.totalorder %s28, 1
      %p203 = por %p201, %p202
      %p204 = scmp.ne.s32.totalorder %s193, %s194
      %p205 = scmp.eq.s32.totalorder %s28, 0
      %p206 = por %p204, %p205
      %p207 = scmp.ne.s32.totalorder %s193, %s194
      %p208 = scmp.eq.s32.totalorder %s29, 1
      %p209 = por %p207, %p208
      %p211 = scmp.ne.s32.totalorder %s194, %s210
      %p212 = scmp.eq.s32.totalorder %s29, 0
      %p213 = por %p211, %p212
      %s214 = ssub.s32 %s23, %s30
      %p215 = scmp.eq.s32.totalorder %s214, 0
      %s217 = sadd.s32 %s216, 1
      %s218 = scalar_select %p215, %s216, %s217
      %p221 = pneg %p215
      %p222 = scmp.eq.s32.totalorder %s23, 1
      %p223 = por %p221, %p222
      %p224 = scmp.ne.s32.totalorder %s216, %s219
      %p225 = scmp.eq.s32.totalorder %s23, 0
      %p226 = por %p224, %p225
      %p227 = scmp.ne.s32.totalorder %s216, %s219
      %p228 = scmp.eq.s32.totalorder %s28, 1
      %p229 = por %p227, %p228
      %p230 = scmp.ne.s32.totalorder %s219, %s220
      %p231 = scmp.eq.s32.totalorder %s28, 0
      %p232 = por %p230, %p231
      %p233 = scmp.ne.s32.totalorder %s219, %s220
      %p234 = scmp.eq.s32.totalorder %s29, 1
      %p235 = por %p233, %p234
      %p237 = scmp.ne.s32.totalorder %s220, %s236
      %p238 = scmp.eq.s32.totalorder %s29, 0
      %p239 = por %p237, %p238
      %s241 = sadd.s32 %s240, 1
      %p244 = scmp.eq.s32.totalorder %s23, 1
      %p245 = scmp.ne.s32.totalorder %s240, %s242
      %p246 = scmp.eq.s32.totalorder %s23, 0
      %p247 = por %p245, %p246
      %p248 = scmp.ne.s32.totalorder %s240, %s242
      %p249 = scmp.eq.s32.totalorder %s28, 1
      %p250 = por %p248, %p249
      %p251 = scmp.ne.s32.totalorder %s242, %s243
      %p252 = scmp.eq.s32.totalorder %s28, 0
      %p253 = por %p251, %p252
      %p254 = scmp.ne.s32.totalorder %s242, %s243
      %p255 = scmp.eq.s32.totalorder %s29, 1
      %p256 = por %p254, %p255
      %p258 = scmp.ne.s32.totalorder %s243, %s257
      %p259 = scmp.eq.s32.totalorder %s29, 0
      %p260 = por %p258, %p259
      %s262 = sadd.s32 %s261, 1
      %p265 = scmp.eq.s32.totalorder %s23, 1
      %p266 = scmp.ne.s32.totalorder %s261, %s263
      %p267 = scmp.eq.s32.totalorder %s23, 0
      %p268 = por %p266, %p267
      %p269 = scmp.ne.s32.totalorder %s261, %s263
      %p270 = scmp.eq.s32.totalorder %s28, 1
      %p271 = por %p269, %p270
      %p272 = scmp.ne.s32.totalorder %s263, %s264
      %p273 = scmp.eq.s32.totalorder %s28, 0
      %p274 = por %p272, %p273
      %p275 = scmp.ne.s32.totalorder %s263, %s264
      %p276 = scmp.eq.s32.totalorder %s29, 1
      %p277 = por %p275, %p276
      %p279 = scmp.ne.s32.totalorder %s264, %s278
      %p280 = scmp.eq.s32.totalorder %s29, 0
      %p281 = por %p279, %p280
      %s282 = ssub.s32 %s23, %s30
      %p283 = scmp.eq.s32.totalorder %s282, 0
      %s285 = sadd.s32 %s284, 1
      %s286 = scalar_select %p283, %s284, %s285
      %p289 = pneg %p283
      %p290 = scmp.eq.s32.totalorder %s23, 1
      %p291 = por %p289, %p290
      %p292 = scmp.ne.s32.totalorder %s284, %s287
      %p293 = scmp.eq.s32.totalorder %s23, 0
      %p294 = por %p292, %p293
      %p295 = scmp.ne.s32.totalorder %s284, %s287
      %p296 = scmp.eq.s32.totalorder %s28, 1
      %p297 = por %p295, %p296
      %p298 = scmp.ne.s32.totalorder %s287, %s288
      %p299 = scmp.eq.s32.totalorder %s28, 0
      %p300 = por %p298, %p299
      %p301 = scmp.ne.s32.totalorder %s287, %s288
      %p302 = scmp.eq.s32.totalorder %s29, 1
      %p303 = por %p301, %p302
      %p305 = scmp.ne.s32.totalorder %s288, %s304
      %p306 = scmp.eq.s32.totalorder %s29, 0
      %p307 = por %p305, %p306
      %p308 = scmp.le.s32.totalorder 1, %s23
      %p309 = scmp.lt.s32.totalorder %s23, 3
      %p310 = pnand %p308, %p309
      %p311 = pneg %p310
      // Predicated region
      $region9: #{tpu_custom_call.1} parent=5 // pred_check
        _
      $region10: #{tpu_custom_call.1} parent=5 // pred_check_branch
        %313 = sbr.rel (%p310) target = $region12
      $region11: #{tpu_custom_call.1} parent=5 // pred_region
        %s314 = ssub.s32 %s23, 1
        // Predicated region
        $region13: #{tpu_custom_call.1} parent=11 // pred_check
          %p315 = pneg %p44
        $region14: #{tpu_custom_call.1} parent=11 // pred_check_branch
          %317 = sbr.rel (%p315) target = $region16
        $region15: #{tpu_custom_call.1} parent=11 // pred_region
          _
        $region16: #{tpu_custom_call.1} parent=11 // pred_fallthru
          _
        // Predicated region
        $region17: #{tpu_custom_call.1} parent=11 // pred_check
          %p318 = pneg %p65
        $region18: #{tpu_custom_call.1} parent=11 // pred_check_branch
          %320 = sbr.rel (%p318) target = $region20
        $region19: #{tpu_custom_call.1} parent=11 // pred_region
          _
        $region20: #{tpu_custom_call.1} parent=11 // pred_fallthru
          _
        // Predicated region
        $region21: #{tpu_custom_call.1} parent=11 // pred_check
          %p321 = pneg %p86
        $region22: #{tpu_custom_call.1} parent=11 // pred_check_branch
          %323 = sbr.rel (%p321) target = $region24
        $region23: #{tpu_custom_call.1} parent=11 // pred_region
          _
        $region24: #{tpu_custom_call.1} parent=11 // pred_fallthru
          _
        // Predicated region
        $region25: #{tpu_custom_call.1} parent=11 // pred_check
          %p324 = pneg %p107
        $region26: #{tpu_custom_call.1} parent=11 // pred_check_branch
          %326 = sbr.rel (%p324) target = $region28
        $region27: #{tpu_custom_call.1} parent=11 // pred_region
          _
        $region28: #{tpu_custom_call.1} parent=11 // pred_fallthru
          _
        // Predicated region
        $region29: #{tpu_custom_call.1} parent=11 // pred_check
          %p327 = pneg %p128
        $region30: #{tpu_custom_call.1} parent=11 // pred_check_branch
          %329 = sbr.rel (%p327) target = $region32
        $region31: #{tpu_custom_call.1} parent=11 // pred_region
          _
        $region32: #{tpu_custom_call.1} parent=11 // pred_fallthru
          _
        // Predicated region
        $region33: #{tpu_custom_call.1} parent=11 // pred_check
          %p330 = pneg %p253
        $region34: #{tpu_custom_call.1} parent=11 // pred_check_branch
          %332 = sbr.rel (%p330) target = $region36
        $region35: #{tpu_custom_call.1} parent=11 // pred_region
          _
        $region36: #{tpu_custom_call.1} parent=11 // pred_fallthru
          _
        // Predicated region
        $region37: #{tpu_custom_call.1} parent=11 // pred_check
          %p333 = pneg %p274
        $region38: #{tpu_custom_call.1} parent=11 // pred_check_branch
          %335 = sbr.rel (%p333) target = $region40
        $region39: #{tpu_custom_call.1} parent=11 // pred_region
          _
        $region40: #{tpu_custom_call.1} parent=11 // pred_fallthru
          _
      $region12: #{tpu_custom_call.1} parent=5 // pred_fallthru
        _
      %p336 = scmp.lt.s32.totalorder %s23, 2
      // Predicated region
      $region41: #{tpu_custom_call.1} parent=5 // pred_check
        %p337 = pneg %p336
      $region42: #{tpu_custom_call.1} parent=5 // pred_check_branch
        %339 = sbr.rel (%p337) target = $region44
      $region43: #{tpu_custom_call.1} parent=5 // pred_region
        // Predicated region
        $region45: #{tpu_custom_call.1} parent=43 // pred_check
          %p340 = pneg %p148
        $region46: #{tpu_custom_call.1} parent=43 // pred_check_branch
          %342 = sbr.rel (%p340) target = $region48
        $region47: #{tpu_custom_call.1} parent=43 // pred_region
          %s343 = sand.u32 %s138, 1
          %s344 = scalar_lea.sflag [#allocation3], %s343
          %s345 = sand.u32 %s138, 1
          %s346 = smul.addr %s345, 128
          %s347 = scalar_lea.vmem [#allocation2], %s346
          %349 = vsyncadd %s344, 0
          %s350 = smul.addr %s23, 4
          %s351 = scalar_lea.hbm %s5, %s350
          %s352 = sshll.u32 %s351, 4
          %s353 = int_to_ptr.hbm [resolvable:$true] %s352
          %s354 = sshll.u32 %s347, 4
          %s355 = int_to_ptr.vmem [resolvable:$true] %s354
          %360 = dma.hbm_to_vmem [thread:$0]  %s353, 2048, %s355, %s344, 128, 64, 4
        $region48: #{tpu_custom_call.1} parent=43 // pred_fallthru
          _
        // Predicated region
        $region49: #{tpu_custom_call.1} parent=43 // pred_check
          %p361 = pneg %p174
        $region50: #{tpu_custom_call.1} parent=43 // pred_check_branch
          %363 = sbr.rel (%p361) target = $region52
        $region51: #{tpu_custom_call.1} parent=43 // pred_region
          %s364 = sand.u32 %s164, 1
          %s365 = sand.u32 %s164, 1
          %s366 = smul.addr %s365, 32
          %s367 = scalar_lea.vmem [#allocation5], %s366
          %s368 = smul.addr %s23, 4
          %s369 = scalar_lea.vmem %s6, %s368
          // Predicated region
          $region53: #{tpu_custom_call.1} parent=51 // pred_check
            _
          $region54: #{tpu_custom_call.1} parent=51 // pred_check_branch
            %371 = sbr.rel (0) target = $region56
          $region55: #{tpu_custom_call.1} parent=51 // pred_region
            // Predicated region
            $region57: #{tpu_custom_call.1} parent=55 // pred_check
              _
            $region58: #{tpu_custom_call.1} parent=55 // pred_check_branch
              %373 = sbr.rel target = $region60
            $region59: #{tpu_custom_call.1} parent=55 // pred_region
              // Predicated region
              $region72: #{tpu_custom_call.1} parent=59 // pred_check
                _
              $region73: #{tpu_custom_call.1} parent=59 // pred_check_branch
                %403 = sbr.rel (0) target = $region75
              $region74: #{tpu_custom_call.1} parent=59 // pred_region
                loop: start=0, step=1, limit=1
                $region76: #{tpu_custom_call.1} parent=74 // loop_pre_header
                  _
                $region77: #{tpu_custom_call.1} parent=74 // loop_header
                  %s405 = sphi 0, %s409
                  %p406 = scmp.ge.s32.totalorder %s405, 1
                  %s410 = sphi %s369, %s369
                  %s411 = sphi %s367, %s367
                $region78: #{tpu_custom_call.1} parent=74 // loop_header_branch
                  %408 = sbr.rel (%p406) target = $region82
                $region79: #{tpu_custom_call.1} parent=74 // loop_body
                  _
                $region80: #{tpu_custom_call.1} parent=74 // loop_footer
                  %s409 = sadd.s32 1, %s405
                $region81: #{tpu_custom_call.1} parent=74 // loop_footer_branch
                  %404 = sbr.rel target = $region77
                $region82: #{tpu_custom_call.1} parent=74 // loop_exit
                  _
                %s413 = ssub.s32 16, 1
                loop: start=0, step=1, limit=1
                $region83: #{tpu_custom_call.1} parent=74 // loop_pre_header
                  _
                $region84: #{tpu_custom_call.1} parent=74 // loop_header
                  %s415 = sphi 0, %s419
                  %p416 = scmp.ge.s32.totalorder %s415, 1
                  %s420 = sphi %s369, %s369
                  %s421 = sphi %s367, %s367
                $region85: #{tpu_custom_call.1} parent=74 // loop_header_branch
                  %418 = sbr.rel (%p416) target = $region89
                $region86: #{tpu_custom_call.1} parent=74 // loop_body
                  %v422 = vld [vmem:[%s420] sm:%s413]
                  %423 = vst [vmem:[%s421] sm:%s413] %v422
                  %v424 = vld [vmem:[%s420 + $0x8] sm:%s413]
                  %425 = vst [vmem:[%s421 + $0x4] sm:%s413] %v424
                  %v426 = vld [vmem:[%s420 + $0x10] sm:%s413]
                  %427 = vst [vmem:[%s421 + $0x8] sm:%s413] %v426
                  %v428 = vld [vmem:[%s420 + $0x18] sm:%s413]
                  %429 = vst [vmem:[%s421 + $0xc] sm:%s413] %v428
                  %v430 = vld [vmem:[%s420 + $0x20] sm:%s413]
                  %431 = vst [vmem:[%s421 + $0x10] sm:%s413] %v430
                  %v432 = vld [vmem:[%s420 + $0x28] sm:%s413]
                  %433 = vst [vmem:[%s421 + $0x14] sm:%s413] %v432
                  %v434 = vld [vmem:[%s420 + $0x30] sm:%s413]
                  %435 = vst [vmem:[%s421 + $0x18] sm:%s413] %v434
                  %v436 = vld [vmem:[%s420 + $0x38] sm:%s413]
                  %437 = vst [vmem:[%s421 + $0x1c] sm:%s413] %v436
                $region87: #{tpu_custom_call.1} parent=74 // loop_footer
                  %s419 = sadd.s32 1, %s415
                $region88: #{tpu_custom_call.1} parent=74 // loop_footer_branch
                  %414 = sbr.rel target = $region84
                $region89: #{tpu_custom_call.1} parent=74 // loop_exit
                  _
              $region75: #{tpu_custom_call.1} parent=59 // pred_fallthru
                _
            $region60: #{tpu_custom_call.1} parent=55 // pred_fallthru
              _
            // Predicated region
            $region61: #{tpu_custom_call.1} parent=55 // pred_check
              _
            $region62: #{tpu_custom_call.1} parent=55 // pred_check_branch
              %375 = sbr.rel (0) target = $region64
            $region63: #{tpu_custom_call.1} parent=55 // pred_region
              %s377 = ssub.s32 16, 1
              loop: start=0, step=1, limit=1
              $region65: #{tpu_custom_call.1} parent=63 // loop_pre_header
                _
              $region66: #{tpu_custom_call.1} parent=63 // loop_header
                %s379 = sphi 0, %s383
                %p380 = scmp.ge.s32.totalorder %s379, 1
                %s384 = sphi %s369, %s369
                %s385 = sphi %s367, %s367
              $region67: #{tpu_custom_call.1} parent=63 // loop_header_branch
                %382 = sbr.rel (%p380) target = $region71
              $region68: #{tpu_custom_call.1} parent=63 // loop_body
                %v386 = vld [vmem:[%s384] sm:%s377]
                %387 = vst [vmem:[%s385] sm:%s377] %v386
                %v388 = vld [vmem:[%s384 + $0x8] sm:%s377]
                %389 = vst [vmem:[%s385 + $0x4] sm:%s377] %v388
                %v390 = vld [vmem:[%s384 + $0x10] sm:%s377]
                %391 = vst [vmem:[%s385 + $0x8] sm:%s377] %v390
                %v392 = vld [vmem:[%s384 + $0x18] sm:%s377]
                %393 = vst [vmem:[%s385 + $0xc] sm:%s377] %v392
                %v394 = vld [vmem:[%s384 + $0x20] sm:%s377]
                %395 = vst [vmem:[%s385 + $0x10] sm:%s377] %v394
                %v396 = vld [vmem:[%s384 + $0x28] sm:%s377]
                %397 = vst [vmem:[%s385 + $0x14] sm:%s377] %v396
                %v398 = vld [vmem:[%s384 + $0x30] sm:%s377]
                %399 = vst [vmem:[%s385 + $0x18] sm:%s377] %v398
                %v400 = vld [vmem:[%s384 + $0x38] sm:%s377]
                %401 = vst [vmem:[%s385 + $0x1c] sm:%s377] %v400
              $region69: #{tpu_custom_call.1} parent=63 // loop_footer
                %s383 = sadd.s32 1, %s379
              $region70: #{tpu_custom_call.1} parent=63 // loop_footer_branch
                %378 = sbr.rel target = $region66
              $region71: #{tpu_custom_call.1} parent=63 // loop_exit
                _
            $region64: #{tpu_custom_call.1} parent=55 // pred_fallthru
              _
          $region56: #{tpu_custom_call.1} parent=51 // pred_fallthru
            _
          %438 = vnop
        $region52: #{tpu_custom_call.1} parent=43 // pred_fallthru
          _
        // Predicated region
        $region90: #{tpu_custom_call.1} parent=43 // pred_check
          %p439 = pneg %p200
        $region91: #{tpu_custom_call.1} parent=43 // pred_check_branch
          %441 = sbr.rel (%p439) target = $region93
        $region92: #{tpu_custom_call.1} parent=43 // pred_region
          %s442 = sand.u32 %s190, 1
          %s443 = sand.u32 %s190, 1
          %s444 = smul.addr %s443, 8
          %s445 = scalar_lea.vmem [#allocation6], %s444
          %s446 = smul.addr %s23, 4
          %s447 = scalar_lea.vmem %s7, %s446
          // Predicated region
          $region94: #{tpu_custom_call.1} parent=92 // pred_check
            _
          $region95: #{tpu_custom_call.1} parent=92 // pred_check_branch
            %449 = sbr.rel (0) target = $region97
          $region96: #{tpu_custom_call.1} parent=92 // pred_region
            // Predicated region
            $region98: #{tpu_custom_call.1} parent=96 // pred_check
              _
            $region99: #{tpu_custom_call.1} parent=96 // pred_check_branch
              %451 = sbr.rel target = $region101
            $region100: #{tpu_custom_call.1} parent=96 // pred_region
              // Predicated region
              $region113: #{tpu_custom_call.1} parent=100 // pred_check
                _
              $region114: #{tpu_custom_call.1} parent=100 // pred_check_branch
                %469 = sbr.rel (0) target = $region116
              $region115: #{tpu_custom_call.1} parent=100 // pred_region
                loop: start=0, step=1, limit=1
                $region117: #{tpu_custom_call.1} parent=115 // loop_pre_header
                  _
                $region118: #{tpu_custom_call.1} parent=115 // loop_header
                  %s471 = sphi 0, %s475
                  %p472 = scmp.ge.s32.totalorder %s471, 1
                  %s476 = sphi %s447, %s447
                  %s477 = sphi %s445, %s445
                $region119: #{tpu_custom_call.1} parent=115 // loop_header_branch
                  %474 = sbr.rel (%p472) target = $region123
                $region120: #{tpu_custom_call.1} parent=115 // loop_body
                  _
                $region121: #{tpu_custom_call.1} parent=115 // loop_footer
                  %s475 = sadd.s32 1, %s471
                $region122: #{tpu_custom_call.1} parent=115 // loop_footer_branch
                  %470 = sbr.rel target = $region118
                $region123: #{tpu_custom_call.1} parent=115 // loop_exit
                  _
                %s479 = ssub.s32 16, 1
                loop: start=0, step=1, limit=1
                $region124: #{tpu_custom_call.1} parent=115 // loop_pre_header
                  _
                $region125: #{tpu_custom_call.1} parent=115 // loop_header
                  %s481 = sphi 0, %s485
                  %p482 = scmp.ge.s32.totalorder %s481, 1
                  %s486 = sphi %s447, %s447
                  %s487 = sphi %s445, %s445
                $region126: #{tpu_custom_call.1} parent=115 // loop_header_branch
                  %484 = sbr.rel (%p482) target = $region130
                $region127: #{tpu_custom_call.1} parent=115 // loop_body
                  %v488 = vld [vmem:[%s486] sm:%s479]
                  %489 = vst [vmem:[%s487] sm:%s479] %v488
                  %v490 = vld [vmem:[%s486 + $0x8] sm:%s479]
                  %491 = vst [vmem:[%s487 + $0x4] sm:%s479] %v490
                $region128: #{tpu_custom_call.1} parent=115 // loop_footer
                  %s485 = sadd.s32 1, %s481
                $region129: #{tpu_custom_call.1} parent=115 // loop_footer_branch
                  %480 = sbr.rel target = $region125
                $region130: #{tpu_custom_call.1} parent=115 // loop_exit
                  _
              $region116: #{tpu_custom_call.1} parent=100 // pred_fallthru
                _
            $region101: #{tpu_custom_call.1} parent=96 // pred_fallthru
              _
            // Predicated region
            $region102: #{tpu_custom_call.1} parent=96 // pred_check
              _
            $region103: #{tpu_custom_call.1} parent=96 // pred_check_branch
              %453 = sbr.rel (0) target = $region105
            $region104: #{tpu_custom_call.1} parent=96 // pred_region
              %s455 = ssub.s32 16, 1
              loop: start=0, step=1, limit=1
              $region106: #{tpu_custom_call.1} parent=104 // loop_pre_header
                _
              $region107: #{tpu_custom_call.1} parent=104 // loop_header
                %s457 = sphi 0, %s461
                %p458 = scmp.ge.s32.totalorder %s457, 1
                %s462 = sphi %s447, %s447
                %s463 = sphi %s445, %s445
              $region108: #{tpu_custom_call.1} parent=104 // loop_header_branch
                %460 = sbr.rel (%p458) target = $region112
              $region109: #{tpu_custom_call.1} parent=104 // loop_body
                %v464 = vld [vmem:[%s462] sm:%s455]
                %465 = vst [vmem:[%s463] sm:%s455] %v464
                %v466 = vld [vmem:[%s462 + $0x8] sm:%s455]
                %467 = vst [vmem:[%s463 + $0x4] sm:%s455] %v466
              $region110: #{tpu_custom_call.1} parent=104 // loop_footer
                %s461 = sadd.s32 1, %s457
              $region111: #{tpu_custom_call.1} parent=104 // loop_footer_branch
                %456 = sbr.rel target = $region107
              $region112: #{tpu_custom_call.1} parent=104 // loop_exit
                _
            $region105: #{tpu_custom_call.1} parent=96 // pred_fallthru
              _
          $region97: #{tpu_custom_call.1} parent=92 // pred_fallthru
            _
          %492 = vnop
        $region93: #{tpu_custom_call.1} parent=43 // pred_fallthru
          _
        // Predicated region
        $region131: #{tpu_custom_call.1} parent=43 // pred_check
          %p493 = pneg %p226
        $region132: #{tpu_custom_call.1} parent=43 // pred_check_branch
          %495 = sbr.rel (%p493) target = $region134
        $region133: #{tpu_custom_call.1} parent=43 // pred_region
          %p496 = scmp.lt.s32.totalorder %s23, 1
          %s497 = scalar_select %p496, %s23, 1
          %s498 = smul.addr %s497, 4
          %s499 = scalar_lea.vmem %s8, %s498
        $region134: #{tpu_custom_call.1} parent=43 // pred_fallthru
          _
      $region44: #{tpu_custom_call.1} parent=5 // pred_fallthru
        _
      %p500 = scmp.le.s32.totalorder 1, %s23
      %p501 = scmp.lt.s32.totalorder %s23, 3
      %p502 = pnand %p500, %p501
      %p503 = pneg %p502
      // Predicated region
      $region135: #{tpu_custom_call.1} parent=5 // pred_check
        _
      $region136: #{tpu_custom_call.1} parent=5 // pred_check_branch
        %505 = sbr.rel (%p502) target = $region138
      $region137: #{tpu_custom_call.1} parent=5 // pred_region
        %s506 = ssub.s32 %s23, 1
        %s507 = sand.u32 %s141, 1
        %s508 = scalar_lea.sflag [#allocation3], %s507
        %s509 = sand.u32 %s141, 1
        %s510 = smul.addr %s509, 128
        %s511 = scalar_lea.vmem [#allocation2], %s510
        // Predicated region
        $region139: #{tpu_custom_call.1} parent=137 // pred_check
          %p512 = pneg %p154
        $region140: #{tpu_custom_call.1} parent=137 // pred_check_branch
          %514 = sbr.rel (%p512) target = $region142
        $region141: #{tpu_custom_call.1} parent=137 // pred_region
          %516 = dma.done %s508, 2048
        $region142: #{tpu_custom_call.1} parent=137 // pred_fallthru
          _
        %s517 = sand.u32 %s167, 1
        %s518 = sand.u32 %s167, 1
        %s519 = smul.addr %s518, 32
        %s520 = scalar_lea.vmem [#allocation5], %s519
        // Predicated region
        $region143: #{tpu_custom_call.1} parent=137 // pred_check
          %p521 = pneg %p180
        $region144: #{tpu_custom_call.1} parent=137 // pred_check_branch
          %523 = sbr.rel (%p521) target = $region146
        $region145: #{tpu_custom_call.1} parent=137 // pred_region
          _
        $region146: #{tpu_custom_call.1} parent=137 // pred_fallthru
          _
        %s524 = sand.u32 %s193, 1
        %s525 = sand.u32 %s193, 1
        %s526 = smul.addr %s525, 8
        %s527 = scalar_lea.vmem [#allocation6], %s526
        // Predicated region
        $region147: #{tpu_custom_call.1} parent=137 // pred_check
          %p528 = pneg %p206
        $region148: #{tpu_custom_call.1} parent=137 // pred_check_branch
          %530 = sbr.rel (%p528) target = $region150
        $region149: #{tpu_custom_call.1} parent=137 // pred_region
          _
        $region150: #{tpu_custom_call.1} parent=137 // pred_fallthru
          _
        %p531 = pneg %p44
        %p532 = pneg %p41
        %p533 = pneg %p65
        %p534 = pneg %p62
        %p535 = pneg %p86
        %p536 = pneg %p83
        %p537 = pneg %p107
        %p538 = pneg %p104
        %p539 = pneg %p128
        %p540 = pneg %p125
        %s541 = sand.u32 %s141, 1
        %s542 = scalar_lea.sflag [#allocation3], %s541
        %s543 = sand.u32 %s141, 1
        %s544 = smul.addr %s543, 128
        %s545 = scalar_lea.vmem [#allocation2], %s544
        %p546 = pneg %p154
        %p547 = pneg %p151
        %s548 = sand.u32 %s167, 1
        %s549 = sand.u32 %s167, 1
        %s550 = smul.addr %s549, 32
        %s551 = scalar_lea.vmem [#allocation5], %s550
        %p552 = pneg %p180
        %p553 = pneg %p177
        %s554 = sand.u32 %s193, 1
        %s555 = sand.u32 %s193, 1
        %s556 = smul.addr %s555, 8
        %s557 = scalar_lea.vmem [#allocation6], %s556
        %p558 = pneg %p206
        %p559 = pneg %p203
        %p560 = scmp.lt.s32.totalorder %s28, 1
        %s561 = scalar_select %p560, %s28, 1
        %s562 = smul.addr %s561, 4
        %s563 = scalar_lea.vmem %s8, %s562
        %p564 = pneg %p232
        %p565 = pneg %p229
        %p566 = pneg %p253
        %p567 = pneg %p250
        %p568 = pneg %p274
        %p569 = pneg %p271
        %p570 = pneg %p300
        %p571 = pneg %p297
        %s572 = sand.u32 %s287, 1
        %s573 = scalar_lea.sflag [#allocation4], %s572
        %s574 = sand.u32 %s287, 1
        %s575 = smul.addr %s574, 16
        %s576 = scalar_lea.vmem [#allocation7], %s575
        %p577 = scmp.lt.s32.totalorder %s28, 1
        %s578 = scalar_select %p577, %s28, 1
        %s579 = smul.addr %s578, 4
        %s580 = scalar_lea.vmem %s8, %s579
        %v582 = vld [vmem:[%s0] sm:$0xff]
        %v583 = vld [vmem:[%s1] sm:$0xff]
        %v584 = vld [vmem:[%s1 + $0x8] sm:$0xff]
        %v585 = vld [vmem:[%s1 + $0x10] sm:$0xff]
        %v586 = vld [vmem:[%s1 + $0x18] sm:$0xff]
        %v587 = vld [vmem:[%s1 + $0x20] sm:$0xff]
        %v588 = vld [vmem:[%s1 + $0x28] sm:$0xff]
        %v589 = vld [vmem:[%s1 + $0x30] sm:$0xff]
        %v590 = vld [vmem:[%s1 + $0x38] sm:$0xff]
        %v591 = vld [vmem:[%s1 + $0x40] sm:$0xff]
        %v592 = vld [vmem:[%s1 + $0x48] sm:$0xff]
        %v593 = vld [vmem:[%s1 + $0x50] sm:$0xff]
        %v594 = vld [vmem:[%s1 + $0x58] sm:$0xff]
        %v595 = vld [vmem:[%s1 + $0x60] sm:$0xff]
        %v596 = vld [vmem:[%s1 + $0x68] sm:$0xff]
        %v597 = vld [vmem:[%s1 + $0x70] sm:$0xff]
        %v598 = vld [vmem:[%s1 + $0x78] sm:$0xff]
        %v599 = vld [vmem:[%s1 + $0x80] sm:$0xff]
        %v600 = vld [vmem:[%s1 + $0x88] sm:$0xff]
        %v601 = vld [vmem:[%s1 + $0x90] sm:$0xff]
        %v602 = vld [vmem:[%s1 + $0x98] sm:$0xff]
        %v603 = vld [vmem:[%s1 + $0xa0] sm:$0xff]
        %v604 = vld [vmem:[%s1 + $0xa8] sm:$0xff]
        %v605 = vld [vmem:[%s1 + $0xb0] sm:$0xff]
        %v606 = vld [vmem:[%s1 + $0xb8] sm:$0xff]
        %v607 = vld [vmem:[%s1 + $0xc0] sm:$0xff]
        %v608 = vld [vmem:[%s1 + $0xc8] sm:$0xff]
        %v609 = vld [vmem:[%s1 + $0xd0] sm:$0xff]
        %v610 = vld [vmem:[%s1 + $0xd8] sm:$0xff]
        %v611 = vld [vmem:[%s1 + $0xe0] sm:$0xff]
        %v612 = vld [vmem:[%s1 + $0xe8] sm:$0xff]
        %v613 = vld [vmem:[%s1 + $0xf0] sm:$0xff]
        %v614 = vld [vmem:[%s1 + $0xf8] sm:$0xff]
        %v616 = vunpack.c.l.b16 %v582
        %v617 = vunpack.c.h.b16 %v582
        %v618 = vpack.c.b16 %v616, %v616
        %v619 = vpack.c.b16 %v617, %v617
        %v654 = vunpack.c.l.b16 %v583
        %v655 = vunpack.c.h.b16 %v583
        %v656 = vunpack.c.l.b16 %v584
        %v657 = vunpack.c.h.b16 %v584
        %v658 = vunpack.c.l.b16 %v585
        %v659 = vunpack.c.h.b16 %v585
        %v660 = vunpack.c.l.b16 %v586
        %v661 = vunpack.c.h.b16 %v586
        %v662 = vunpack.c.l.b16 %v587
        %v663 = vunpack.c.h.b16 %v587
        %v664 = vunpack.c.l.b16 %v588
        %v665 = vunpack.c.h.b16 %v588
        %v666 = vunpack.c.l.b16 %v589
        %v667 = vunpack.c.h.b16 %v589
        %v668 = vunpack.c.l.b16 %v590
        %v669 = vunpack.c.h.b16 %v590
        %v670 = vunpack.c.l.b16 %v591
        %v671 = vunpack.c.h.b16 %v591
        %v672 = vunpack.c.l.b16 %v592
        %v673 = vunpack.c.h.b16 %v592
        %v674 = vunpack.c.l.b16 %v593
        %v675 = vunpack.c.h.b16 %v593
        %v676 = vunpack.c.l.b16 %v594
        %v677 = vunpack.c.h.b16 %v594
        %v678 = vunpack.c.l.b16 %v595
        %v679 = vunpack.c.h.b16 %v595
        %v680 = vunpack.c.l.b16 %v596
        %v681 = vunpack.c.h.b16 %v596
        %v682 = vunpack.c.l.b16 %v597
        %v683 = vunpack.c.h.b16 %v597
        %v684 = vunpack.c.l.b16 %v598
        %v685 = vunpack.c.h.b16 %v598
        %v686 = vunpack.c.l.b16 %v599
        %v687 = vunpack.c.h.b16 %v599
        %v688 = vunpack.c.l.b16 %v600
        %v689 = vunpack.c.h.b16 %v600
        %v690 = vunpack.c.l.b16 %v601
        %v691 = vunpack.c.h.b16 %v601
        %v692 = vunpack.c.l.b16 %v602
        %v693 = vunpack.c.h.b16 %v602
        %v694 = vunpack.c.l.b16 %v603
        %v695 = vunpack.c.h.b16 %v603
        %v696 = vunpack.c.l.b16 %v604
        %v697 = vunpack.c.h.b16 %v604
        %v698 = vunpack.c.l.b16 %v605
        %v699 = vunpack.c.h.b16 %v605
        %v700 = vunpack.c.l.b16 %v606
        %v701 = vunpack.c.h.b16 %v606
        %v702 = vunpack.c.l.b16 %v607
        %v703 = vunpack.c.h.b16 %v607
        %v704 = vunpack.c.l.b16 %v608
        %v705 = vunpack.c.h.b16 %v608
        %v706 = vunpack.c.l.b16 %v609
        %v707 = vunpack.c.h.b16 %v609
        %v708 = vunpack.c.l.b16 %v610
        %v709 = vunpack.c.h.b16 %v610
        %v710 = vunpack.c.l.b16 %v611
        %v711 = vunpack.c.h.b16 %v611
        %v712 = vunpack.c.l.b16 %v612
        %v713 = vunpack.c.h.b16 %v612
        %v714 = vunpack.c.l.b16 %v613
        %v715 = vunpack.c.h.b16 %v613
        %v716 = vunpack.c.l.b16 %v614
        %v717 = vunpack.c.h.b16 %v614
        %v718 = vpack.c.b16 %v656, %v654
        %v719 = vpack.c.b16 %v657, %v655
        %v720 = vpack.c.b16 %v660, %v658
        %v721 = vpack.c.b16 %v661, %v659
        %v722 = vpack.c.b16 %v664, %v662
        %v723 = vpack.c.b16 %v665, %v663
        %v724 = vpack.c.b16 %v668, %v666
        %v725 = vpack.c.b16 %v669, %v667
        %v726 = vpack.c.b16 %v672, %v670
        %v727 = vpack.c.b16 %v673, %v671
        %v728 = vpack.c.b16 %v676, %v674
        %v729 = vpack.c.b16 %v677, %v675
        %v730 = vpack.c.b16 %v680, %v678
        %v731 = vpack.c.b16 %v681, %v679
        %v732 = vpack.c.b16 %v684, %v682
        %v733 = vpack.c.b16 %v685, %v683
        %v734 = vpack.c.b16 %v688, %v686
        %v735 = vpack.c.b16 %v689, %v687
        %v736 = vpack.c.b16 %v692, %v690
        %v737 = vpack.c.b16 %v693, %v691
        %v738 = vpack.c.b16 %v696, %v694
        %v739 = vpack.c.b16 %v697, %v695
        %v740 = vpack.c.b16 %v700, %v698
        %v741 = vpack.c.b16 %v701, %v699
        %v742 = vpack.c.b16 %v704, %v702
        %v743 = vpack.c.b16 %v705, %v703
        %v744 = vpack.c.b16 %v708, %v706
        %v745 = vpack.c.b16 %v709, %v707
        %v746 = vpack.c.b16 %v712, %v710
        %v747 = vpack.c.b16 %v713, %v711
        %v748 = vpack.c.b16 %v716, %v714
        %v749 = vpack.c.b16 %v717, %v715
        %782 = vmatpush.bf16.msra.mxu0 %v732
        %783 = vmatpush.bf16.msra.mxu0 %v730
        %784 = vmatpush.bf16.msra.mxu0 %v728
        %785 = vmatpush.bf16.msra.mxu0 %v726
        %786 = vmatpush.bf16.msra.mxu0 %v724
        %787 = vmatpush.bf16.msra.mxu0 %v722
        %788 = vmatpush.bf16.msra.mxu0 %v720
        %789 = vmatpush.bf16.msra.mxu0 %v718
        %790 = vmatmul.bf16.gmra.mxu0 %v618
        %v791 = vpop.f32.mrf.mxu0
        %v792 = vadd.f32 0.0, %v791
        %v793 = vpop.f32.mrf.mxu0
        %794 = vdwg.mxu0
        %795 = vmatpush.bf16.msra.mxu0 %v748
        %796 = vmatpush.bf16.msra.mxu0 %v746
        %797 = vmatpush.bf16.msra.mxu0 %v744
        %798 = vmatpush.bf16.msra.mxu0 %v742
        %799 = vmatpush.bf16.msra.mxu0 %v740
        %800 = vmatpush.bf16.msra.mxu0 %v738
        %801 = vmatpush.bf16.msra.mxu0 %v736
        %802 = vmatpush.bf16.msra.mxu0 %v734
        %803 = vmatmul.bf16.gmra.mxu0 %v619
        %v804 = vpop.f32.mrf.mxu0
        %v805 = vadd.f32 %v792, %v804
        %v806 = vpop.f32.mrf.mxu0
        %807 = vdwg.mxu0
        %808 = vmatpush.bf16.msra.mxu0 %v733
        %809 = vmatpush.bf16.msra.mxu0 %v731
        %810 = vmatpush.bf16.msra.mxu0 %v729
        %811 = vmatpush.bf16.msra.mxu0 %v727
        %812 = vmatpush.bf16.msra.mxu0 %v725
        %813 = vmatpush.bf16.msra.mxu0 %v723
        %814 = vmatpush.bf16.msra.mxu0 %v721
        %815 = vmatpush.bf16.msra.mxu0 %v719
        %816 = vmatmul.bf16.gmra.mxu0 %v618
        %v817 = vpop.f32.mrf.mxu0
        %v818 = vadd.f32 0.0, %v817
        %v819 = vpop.f32.mrf.mxu0
        %820 = vdwg.mxu0
        %821 = vmatpush.bf16.msra.mxu0 %v749
        %822 = vmatpush.bf16.msra.mxu0 %v747
        %823 = vmatpush.bf16.msra.mxu0 %v745
        %824 = vmatpush.bf16.msra.mxu0 %v743
        %825 = vmatpush.bf16.msra.mxu0 %v741
        %826 = vmatpush.bf16.msra.mxu0 %v739
        %827 = vmatpush.bf16.msra.mxu0 %v737
        %828 = vmatpush.bf16.msra.mxu0 %v735
        %829 = vmatmul.bf16.gmra.mxu0 %v619
        %v830 = vpop.f32.mrf.mxu0
        %v831 = vadd.f32 %v818, %v830
        %v832 = vpop.f32.mrf.mxu0
        %833 = vdwg.mxu0
        %v834 = vld [vmem:[%s9] sm:$0xf]
        %v835 = vld [vmem:[%s9 + $0x4] sm:$0xf]
        %v836 = vpack.c.bf16 %v805, %v805
        %v837 = vpack.c.bf16 %v831, %v831
        %v838 = vld [vmem:[%s10] sm:$0xff]
        %v839 = vld [vmem:[%s10 + $0x8] sm:$0xff]
        %841 = vset.pattern.permute.xlu0 0
        %842 = vperm.xlu0 %841, %v838
        %v843 = vpop.permute.xlu0 %842
        %846 = vset.pattern.permute.xlu0 0
        %847 = vperm.xlu0 %846, %v839
        %v848 = vpop.permute.xlu0 %847
        %v852 = vunpack.c.l.b16 %v834
        %v853 = vunpack.c.l.b16 %v835
        %v854 = vpack.c.b16 %v853, %v852
        %vm855 = vcmask 64512
        %v857 = vsel %vm855, %v854, 0
        %vm859 = vcmask 1043456
        %v861 = vsel %vm859, %v836, 0
        %v864 = vsel %vm859, %v837, 0
        %866 = vmatpush.bf16.msra.mxu0 0
        %867 = vmatpush.bf16.msra.mxu0 0
        %868 = vmatpush.bf16.msra.mxu0 0
        %869 = vmatpush.bf16.msra.mxu0 0
        %870 = vmatpush.bf16.msra.mxu0 0
        %871 = vmatpush.bf16.msra.mxu0 0
        %872 = vmatpush.bf16.msra.mxu0 0
        %873 = vmatpush.bf16.msra.mxu0 %v861
        %874 = vmatmul.bf16.gmra.mxu0 %v857
        %v875 = vpop.f32.mrf.mxu0
        %v876 = vadd.f32 %v843, %v875
        %v877 = vpop.f32.mrf.mxu0
        %v878 = vadd.f32 %v848, %v877
        %879 = vdwg.mxu0
        %880 = vmatpush.bf16.msra.mxu0 0
        %881 = vmatpush.bf16.msra.mxu0 0
        %882 = vmatpush.bf16.msra.mxu0 0
        %883 = vmatpush.bf16.msra.mxu0 0
        %884 = vmatpush.bf16.msra.mxu0 0
        %885 = vmatpush.bf16.msra.mxu0 0
        %886 = vmatpush.bf16.msra.mxu0 0
        %887 = vmatpush.bf16.msra.mxu0 %v864
        %888 = vmatmul.bf16.gmra.mxu0 %v857
        %v889 = vpop.f32.mrf.mxu0
        %v890 = vadd.f32 %v843, %v889
        %v891 = vpop.f32.mrf.mxu0
        %v892 = vadd.f32 %v848, %v891
        %893 = vdwg.mxu0
        %v894 = vmax.f32 %v876, 0.0
        %v895 = vmax.f32 %v890, 0.0
        %v896 = vmax.f32 %v878, 0.0
        %v897 = vmax.f32 %v892, 0.0
        %v898 = vpack.c.bf16 %v896, %v894
        %v899 = vpack.c.bf16 %v897, %v895
        %v900 = vld [vmem:[%s511] sm:$0xf]
        %v901 = vld [vmem:[%s511 + $0x4] sm:$0xf]
        %v902 = vld [vmem:[%s511 + $0x8] sm:$0xf]
        %v903 = vld [vmem:[%s511 + $0xc] sm:$0xf]
        %v904 = vld [vmem:[%s511 + $0x10] sm:$0xf]
        %v905 = vld [vmem:[%s511 + $0x14] sm:$0xf]
        %v906 = vld [vmem:[%s511 + $0x18] sm:$0xf]
        %v907 = vld [vmem:[%s511 + $0x1c] sm:$0xf]
        %v908 = vld [vmem:[%s511 + $0x20] sm:$0xf]
        %v909 = vld [vmem:[%s511 + $0x24] sm:$0xf]
        %v910 = vld [vmem:[%s511 + $0x28] sm:$0xf]
        %v911 = vld [vmem:[%s511 + $0x2c] sm:$0xf]
        %v912 = vld [vmem:[%s511 + $0x30] sm:$0xf]
        %v913 = vld [vmem:[%s511 + $0x34] sm:$0xf]
        %v914 = vld [vmem:[%s511 + $0x38] sm:$0xf]
        %v915 = vld [vmem:[%s511 + $0x3c] sm:$0xf]
        %v916 = vld [vmem:[%s511 + $0x40] sm:$0xf]
        %v917 = vld [vmem:[%s511 + $0x44] sm:$0xf]
        %v918 = vld [vmem:[%s511 + $0x48] sm:$0xf]
        %v919 = vld [vmem:[%s511 + $0x4c] sm:$0xf]
        %v920 = vld [vmem:[%s511 + $0x50] sm:$0xf]
        %v921 = vld [vmem:[%s511 + $0x54] sm:$0xf]
        %v922 = vld [vmem:[%s511 + $0x58] sm:$0xf]
        %v923 = vld [vmem:[%s511 + $0x5c] sm:$0xf]
        %v924 = vld [vmem:[%s511 + $0x60] sm:$0xf]
        %v925 = vld [vmem:[%s511 + $0x64] sm:$0xf]
        %v926 = vld [vmem:[%s511 + $0x68] sm:$0xf]
        %v927 = vld [vmem:[%s511 + $0x6c] sm:$0xf]
        %v928 = vld [vmem:[%s511 + $0x70] sm:$0xf]
        %v929 = vld [vmem:[%s511 + $0x74] sm:$0xf]
        %v930 = vld [vmem:[%s511 + $0x78] sm:$0xf]
        %v931 = vld [vmem:[%s511 + $0x7c] sm:$0xf]
        %v932 = vld [vmem:[%s2] sm:$0xf]
        %v933 = vld [vmem:[%s2 + $0x4] sm:$0xf]
        %v934 = vld [vmem:[%s2 + $0x8] sm:$0xf]
        %v935 = vld [vmem:[%s2 + $0xc] sm:$0xf]
        %v936 = vld [vmem:[%s2 + $0x10] sm:$0xf]
        %v937 = vld [vmem:[%s2 + $0x14] sm:$0xf]
        %v938 = vld [vmem:[%s2 + $0x18] sm:$0xf]
        %v939 = vld [vmem:[%s2 + $0x1c] sm:$0xf]
        %v940 = vld [vmem:[%s2 + $0x20] sm:$0xf]
        %v941 = vld [vmem:[%s2 + $0x24] sm:$0xf]
        %v942 = vld [vmem:[%s2 + $0x28] sm:$0xf]
        %v943 = vld [vmem:[%s2 + $0x2c] sm:$0xf]
        %v944 = vld [vmem:[%s2 + $0x30] sm:$0xf]
        %v945 = vld [vmem:[%s2 + $0x34] sm:$0xf]
        %v946 = vld [vmem:[%s2 + $0x38] sm:$0xf]
        %v947 = vld [vmem:[%s2 + $0x3c] sm:$0xf]
        %v948 = vld [vmem:[%s2 + $0x40] sm:$0xf]
        %v949 = vld [vmem:[%s2 + $0x44] sm:$0xf]
        %v950 = vld [vmem:[%s2 + $0x48] sm:$0xf]
        %v951 = vld [vmem:[%s2 + $0x4c] sm:$0xf]
        %v952 = vld [vmem:[%s2 + $0x50] sm:$0xf]
        %v953 = vld [vmem:[%s2 + $0x54] sm:$0xf]
        %v954 = vld [vmem:[%s2 + $0x58] sm:$0xf]
        %v955 = vld [vmem:[%s2 + $0x5c] sm:$0xf]
        %v956 = vld [vmem:[%s2 + $0x60] sm:$0xf]
        %v957 = vld [vmem:[%s2 + $0x64] sm:$0xf]
        %v958 = vld [vmem:[%s2 + $0x68] sm:$0xf]
        %v959 = vld [vmem:[%s2 + $0x6c] sm:$0xf]
        %v960 = vld [vmem:[%s2 + $0x70] sm:$0xf]
        %v961 = vld [vmem:[%s2 + $0x74] sm:$0xf]
        %v962 = vld [vmem:[%s2 + $0x78] sm:$0xf]
        %v963 = vld [vmem:[%s2 + $0x7c] sm:$0xf]
        %v996 = vunpack.c.l.b16 %v932
        %v997 = vunpack.c.l.b16 %v933
        %v998 = vunpack.c.l.b16 %v934
        %v999 = vunpack.c.l.b16 %v935
        %v1000 = vunpack.c.l.b16 %v936
        %v1001 = vunpack.c.l.b16 %v937
        %v1002 = vunpack.c.l.b16 %v938
        %v1003 = vunpack.c.l.b16 %v939
        %v1004 = vunpack.c.l.b16 %v940
        %v1005 = vunpack.c.l.b16 %v941
        %v1006 = vunpack.c.l.b16 %v942
        %v1007 = vunpack.c.l.b16 %v943
        %v1008 = vunpack.c.l.b16 %v944
        %v1009 = vunpack.c.l.b16 %v945
        %v1010 = vunpack.c.l.b16 %v946
        %v1011 = vunpack.c.l.b16 %v947
        %v1012 = vunpack.c.l.b16 %v948
        %v1013 = vunpack.c.l.b16 %v949
        %v1014 = vunpack.c.l.b16 %v950
        %v1015 = vunpack.c.l.b16 %v951
        %v1016 = vunpack.c.l.b16 %v952
        %v1017 = vunpack.c.l.b16 %v953
        %v1018 = vunpack.c.l.b16 %v954
        %v1019 = vunpack.c.l.b16 %v955
        %v1020 = vunpack.c.l.b16 %v956
        %v1021 = vunpack.c.l.b16 %v957
        %v1022 = vunpack.c.l.b16 %v958
        %v1023 = vunpack.c.l.b16 %v959
        %v1024 = vunpack.c.l.b16 %v960
        %v1025 = vunpack.c.l.b16 %v961
        %v1026 = vunpack.c.l.b16 %v962
        %v1027 = vunpack.c.l.b16 %v963
        %v1028 = vpack.c.b16 %v997, %v996
        %v1029 = vpack.c.b16 %v999, %v998
        %v1030 = vpack.c.b16 %v1001, %v1000
        %v1031 = vpack.c.b16 %v1003, %v1002
        %v1032 = vpack.c.b16 %v1005, %v1004
        %v1033 = vpack.c.b16 %v1007, %v1006
        %v1034 = vpack.c.b16 %v1009, %v1008
        %v1035 = vpack.c.b16 %v1011, %v1010
        %v1036 = vpack.c.b16 %v1013, %v1012
        %v1037 = vpack.c.b16 %v1015, %v1014
        %v1038 = vpack.c.b16 %v1017, %v1016
        %v1039 = vpack.c.b16 %v1019, %v1018
        %v1040 = vpack.c.b16 %v1021, %v1020
        %v1041 = vpack.c.b16 %v1023, %v1022
        %v1042 = vpack.c.b16 %v1025, %v1024
        %v1043 = vpack.c.b16 %v1027, %v1026
        %1060 = vmatpush.bf16.msra.mxu0 %v1035
        %1061 = vmatpush.bf16.msra.mxu0 %v1034
        %1062 = vmatpush.bf16.msra.mxu0 %v1033
        %1063 = vmatpush.bf16.msra.mxu0 %v1032
        %1064 = vmatpush.bf16.msra.mxu0 %v1031
        %1065 = vmatpush.bf16.msra.mxu0 %v1030
        %1066 = vmatpush.bf16.msra.mxu0 %v1029
        %1067 = vmatpush.bf16.msra.mxu0 %v1028
        %1068 = vmatmul.bf16.gmra.mxu0 %v618
        %v1069 = vpop.f32.mrf.mxu0
        %v1070 = vadd.f32 0.0, %v1069
        %v1071 = vpop.f32.mrf.mxu0
        %1072 = vdwg.mxu0
        %1073 = vmatpush.bf16.msra.mxu0 %v1043
        %1074 = vmatpush.bf16.msra.mxu0 %v1042
        %1075 = vmatpush.bf16.msra.mxu0 %v1041
        %1076 = vmatpush.bf16.msra.mxu0 %v1040
        %1077 = vmatpush.bf16.msra.mxu0 %v1039
        %1078 = vmatpush.bf16.msra.mxu0 %v1038
        %1079 = vmatpush.bf16.msra.mxu0 %v1037
        %1080 = vmatpush.bf16.msra.mxu0 %v1036
        %1081 = vmatmul.bf16.gmra.mxu0 %v619
        %v1082 = vpop.f32.mrf.mxu0
        %v1083 = vadd.f32 %v1070, %v1082
        %v1084 = vpop.f32.mrf.mxu0
        %1085 = vdwg.mxu0
        %s1086 = scalar_lea.vmem %s9, 8
        %v1087 = vld [vmem:[%s1086] sm:$0xf]
        %v1088 = vld [vmem:[%s1086 + $0x4] sm:$0xf]
        %v1089 = vpack.c.bf16 %v1083, %v1083
        %s1090 = scalar_lea.vmem %s10, 16
        %v1091 = vld [vmem:[%s1090] sm:$0xff]
        %v1092 = vld [vmem:[%s1090 + $0x8] sm:$0xff]
        %1094 = vset.pattern.permute.xlu0 0
        %1095 = vperm.xlu0 %1094, %v1091
        %v1096 = vpop.permute.xlu0 %1095
        %1099 = vset.pattern.permute.xlu0 0
        %1100 = vperm.xlu0 %1099, %v1092
        %v1101 = vpop.permute.xlu0 %1100
        %v1105 = vunpack.c.l.b16 %v1087
        %v1106 = vunpack.c.l.b16 %v1088
        %v1107 = vpack.c.b16 %v1106, %v1105
        %v1109 = vsel %vm855, %v1107, 0
        %v1112 = vsel %vm859, %v1089, 0
        %1114 = vmatpush.bf16.msra.mxu0 0
        %1115 = vmatpush.bf16.msra.mxu0 0
        %1116 = vmatpush.bf16.msra.mxu0 0
        %1117 = vmatpush.bf16.msra.mxu0 0
        %1118 = vmatpush.bf16.msra.mxu0 0
        %1119 = vmatpush.bf16.msra.mxu0 0
        %1120 = vmatpush.bf16.msra.mxu0 0
        %1121 = vmatpush.bf16.msra.mxu0 %v1112
        %1122 = vmatmul.bf16.gmra.mxu0 %v1109
        %v1123 = vpop.f32.mrf.mxu0
        %v1124 = vadd.f32 %v1096, %v1123
        %v1125 = vpop.f32.mrf.mxu0
        %v1126 = vadd.f32 %v1101, %v1125
        %1127 = vdwg.mxu0
        %v1128 = vmax.f32 %v1124, 0.0
        %v1129 = vmax.f32 %v1126, 0.0
        %v1130 = vpack.c.bf16 %v1129, %v1128
        %v1131 = vld [vmem:[%s520] sm:$0xf]
        %v1132 = vld [vmem:[%s520 + $0x4] sm:$0xf]
        %v1133 = vld [vmem:[%s520 + $0x8] sm:$0xf]
        %v1134 = vld [vmem:[%s520 + $0xc] sm:$0xf]
        %v1135 = vld [vmem:[%s520 + $0x10] sm:$0xf]
        %v1136 = vld [vmem:[%s520 + $0x14] sm:$0xf]
        %v1137 = vld [vmem:[%s520 + $0x18] sm:$0xf]
        %v1138 = vld [vmem:[%s520 + $0x1c] sm:$0xf]
        %v1147 = vunpack.c.l.b16 %v1131
        %v1148 = vunpack.c.l.b16 %v1132
        %v1149 = vunpack.c.l.b16 %v1133
        %v1150 = vunpack.c.l.b16 %v1134
        %v1151 = vunpack.c.l.b16 %v1135
        %v1152 = vunpack.c.l.b16 %v1136
        %v1153 = vunpack.c.l.b16 %v1137
        %v1154 = vunpack.c.l.b16 %v1138
        %v1155 = vpack.c.b16 %v1148, %v1147
        %v1156 = vpack.c.b16 %v1150, %v1149
        %v1157 = vpack.c.b16 %v1152, %v1151
        %v1158 = vpack.c.b16 %v1154, %v1153
        %vm1163 = vcmask 523264
        %v1165 = vsel %vm1163, %v1130, 0
        %1167 = vmatpush.bf16.msra.mxu0 0
        %1168 = vmatpush.bf16.msra.mxu0 0
        %1169 = vmatpush.bf16.msra.mxu0 0
        %1170 = vmatpush.bf16.msra.mxu0 0
        %1171 = vmatpush.bf16.msra.mxu0 %v1158
        %1172 = vmatpush.bf16.msra.mxu0 %v1157
        %1173 = vmatpush.bf16.msra.mxu0 %v1156
        %1174 = vmatpush.bf16.msra.mxu0 %v1155
        %1175 = vmatmul.bf16.gmra.mxu0 %v1165
        %v1176 = vpop.f32.mrf.mxu0
        %v1177 = vadd.f32 0.0, %v1176
        %v1178 = vpop.f32.mrf.mxu0
        %v1179 = vadd.f32 0.0, %v1178
        %1180 = vdwg.mxu0
        %v1213 = vunpack.c.l.b16 %v900
        %v1214 = vunpack.c.l.b16 %v901
        %v1215 = vunpack.c.l.b16 %v902
        %v1216 = vunpack.c.l.b16 %v903
        %v1217 = vunpack.c.l.b16 %v904
        %v1218 = vunpack.c.l.b16 %v905
        %v1219 = vunpack.c.l.b16 %v906
        %v1220 = vunpack.c.l.b16 %v907
        %v1221 = vunpack.c.l.b16 %v908
        %v1222 = vunpack.c.l.b16 %v909
        %v1223 = vunpack.c.l.b16 %v910
        %v1224 = vunpack.c.l.b16 %v911
        %v1225 = vunpack.c.l.b16 %v912
        %v1226 = vunpack.c.l.b16 %v913
        %v1227 = vunpack.c.l.b16 %v914
        %v1228 = vunpack.c.l.b16 %v915
        %v1229 = vunpack.c.l.b16 %v916
        %v1230 = vunpack.c.l.b16 %v917
        %v1231 = vunpack.c.l.b16 %v918
        %v1232 = vunpack.c.l.b16 %v919
        %v1233 = vunpack.c.l.b16 %v920
        %v1234 = vunpack.c.l.b16 %v921
        %v1235 = vunpack.c.l.b16 %v922
        %v1236 = vunpack.c.l.b16 %v923
        %v1237 = vunpack.c.l.b16 %v924
        %v1238 = vunpack.c.l.b16 %v925
        %v1239 = vunpack.c.l.b16 %v926
        %v1240 = vunpack.c.l.b16 %v927
        %v1241 = vunpack.c.l.b16 %v928
        %v1242 = vunpack.c.l.b16 %v929
        %v1243 = vunpack.c.l.b16 %v930
        %v1244 = vunpack.c.l.b16 %v931
        %v1245 = vpack.c.b16 %v1214, %v1213
        %v1246 = vpack.c.b16 %v1216, %v1215
        %v1247 = vpack.c.b16 %v1218, %v1217
        %v1248 = vpack.c.b16 %v1220, %v1219
        %v1249 = vpack.c.b16 %v1222, %v1221
        %v1250 = vpack.c.b16 %v1224, %v1223
        %v1251 = vpack.c.b16 %v1226, %v1225
        %v1252 = vpack.c.b16 %v1228, %v1227
        %v1253 = vpack.c.b16 %v1230, %v1229
        %v1254 = vpack.c.b16 %v1232, %v1231
        %v1255 = vpack.c.b16 %v1234, %v1233
        %v1256 = vpack.c.b16 %v1236, %v1235
        %v1257 = vpack.c.b16 %v1238, %v1237
        %v1258 = vpack.c.b16 %v1240, %v1239
        %v1259 = vpack.c.b16 %v1242, %v1241
        %v1260 = vpack.c.b16 %v1244, %v1243
        %1277 = vmatpush.bf16.msra.mxu0 %v1252
        %1278 = vmatpush.bf16.msra.mxu0 %v1251
        %1279 = vmatpush.bf16.msra.mxu0 %v1250
        %1280 = vmatpush.bf16.msra.mxu0 %v1249
        %1281 = vmatpush.bf16.msra.mxu0 %v1248
        %1282 = vmatpush.bf16.msra.mxu0 %v1247
        %1283 = vmatpush.bf16.msra.mxu0 %v1246
        %1284 = vmatpush.bf16.msra.mxu0 %v1245
        %1285 = vmatmul.bf16.gmra.mxu0 %v898
        %v1286 = vpop.f32.mrf.mxu0
        %v1287 = vadd.f32 %v1177, %v1286
        %v1288 = vpop.f32.mrf.mxu0
        %v1289 = vadd.f32 %v1179, %v1288
        %1290 = vdwg.mxu0
        %1291 = vmatpush.bf16.msra.mxu0 %v1260
        %1292 = vmatpush.bf16.msra.mxu0 %v1259
        %1293 = vmatpush.bf16.msra.mxu0 %v1258
        %1294 = vmatpush.bf16.msra.mxu0 %v1257
        %1295 = vmatpush.bf16.msra.mxu0 %v1256
        %1296 = vmatpush.bf16.msra.mxu0 %v1255
        %1297 = vmatpush.bf16.msra.mxu0 %v1254
        %1298 = vmatpush.bf16.msra.mxu0 %v1253
        %1299 = vmatmul.bf16.gmra.mxu0 %v899
        %v1300 = vpop.f32.mrf.mxu0
        %v1301 = vadd.f32 %v1287, %v1300
        %v1302 = vpop.f32.mrf.mxu0
        %v1303 = vadd.f32 %v1289, %v1302
        %1304 = vdwg.mxu0
        %v1305 = vld [vmem:[%s3] sm:$0xf]
        %v1306 = vld [vmem:[%s3 + $0x4] sm:$0xf]
        %v1307 = vld [vmem:[%s3 + $0x8] sm:$0xf]
        %v1308 = vld [vmem:[%s3 + $0xc] sm:$0xf]
        %v1309 = vld [vmem:[%s3 + $0x10] sm:$0xf]
        %v1310 = vld [vmem:[%s3 + $0x14] sm:$0xf]
        %v1311 = vld [vmem:[%s3 + $0x18] sm:$0xf]
        %v1312 = vld [vmem:[%s3 + $0x1c] sm:$0xf]
        %v1313 = vld [vmem:[%s3 + $0x20] sm:$0xf]
        %v1314 = vld [vmem:[%s3 + $0x24] sm:$0xf]
        %v1315 = vld [vmem:[%s3 + $0x28] sm:$0xf]
        %v1316 = vld [vmem:[%s3 + $0x2c] sm:$0xf]
        %v1317 = vld [vmem:[%s3 + $0x30] sm:$0xf]
        %v1318 = vld [vmem:[%s3 + $0x34] sm:$0xf]
        %v1319 = vld [vmem:[%s3 + $0x38] sm:$0xf]
        %v1320 = vld [vmem:[%s3 + $0x3c] sm:$0xf]
        %v1321 = vld [vmem:[%s3 + $0x40] sm:$0xf]
        %v1322 = vld [vmem:[%s3 + $0x44] sm:$0xf]
        %v1323 = vld [vmem:[%s3 + $0x48] sm:$0xf]
        %v1324 = vld [vmem:[%s3 + $0x4c] sm:$0xf]
        %v1325 = vld [vmem:[%s3 + $0x50] sm:$0xf]
        %v1326 = vld [vmem:[%s3 + $0x54] sm:$0xf]
        %v1327 = vld [vmem:[%s3 + $0x58] sm:$0xf]
        %v1328 = vld [vmem:[%s3 + $0x5c] sm:$0xf]
        %v1329 = vld [vmem:[%s3 + $0x60] sm:$0xf]
        %v1330 = vld [vmem:[%s3 + $0x64] sm:$0xf]
        %v1331 = vld [vmem:[%s3 + $0x68] sm:$0xf]
        %v1332 = vld [vmem:[%s3 + $0x6c] sm:$0xf]
        %v1333 = vld [vmem:[%s3 + $0x70] sm:$0xf]
        %v1334 = vld [vmem:[%s3 + $0x74] sm:$0xf]
        %v1335 = vld [vmem:[%s3 + $0x78] sm:$0xf]
        %v1336 = vld [vmem:[%s3 + $0x7c] sm:$0xf]
        %v1369 = vunpack.c.l.b16 %v1305
        %v1370 = vunpack.c.l.b16 %v1306
        %v1371 = vunpack.c.l.b16 %v1307
        %v1372 = vunpack.c.l.b16 %v1308
        %v1373 = vunpack.c.l.b16 %v1309
        %v1374 = vunpack.c.l.b16 %v1310
        %v1375 = vunpack.c.l.b16 %v1311
        %v1376 = vunpack.c.l.b16 %v1312
        %v1377 = vunpack.c.l.b16 %v1313
        %v1378 = vunpack.c.l.b16 %v1314
        %v1379 = vunpack.c.l.b16 %v1315
        %v1380 = vunpack.c.l.b16 %v1316
        %v1381 = vunpack.c.l.b16 %v1317
        %v1382 = vunpack.c.l.b16 %v1318
        %v1383 = vunpack.c.l.b16 %v1319
        %v1384 = vunpack.c.l.b16 %v1320
        %v1385 = vunpack.c.l.b16 %v1321
        %v1386 = vunpack.c.l.b16 %v1322
        %v1387 = vunpack.c.l.b16 %v1323
        %v1388 = vunpack.c.l.b16 %v1324
        %v1389 = vunpack.c.l.b16 %v1325
        %v1390 = vunpack.c.l.b16 %v1326
        %v1391 = vunpack.c.l.b16 %v1327
        %v1392 = vunpack.c.l.b16 %v1328
        %v1393 = vunpack.c.l.b16 %v1329
        %v1394 = vunpack.c.l.b16 %v1330
        %v1395 = vunpack.c.l.b16 %v1331
        %v1396 = vunpack.c.l.b16 %v1332
        %v1397 = vunpack.c.l.b16 %v1333
        %v1398 = vunpack.c.l.b16 %v1334
        %v1399 = vunpack.c.l.b16 %v1335
        %v1400 = vunpack.c.l.b16 %v1336
        %v1401 = vpack.c.b16 %v1370, %v1369
        %v1402 = vpack.c.b16 %v1372, %v1371
        %v1403 = vpack.c.b16 %v1374, %v1373
        %v1404 = vpack.c.b16 %v1376, %v1375
        %v1405 = vpack.c.b16 %v1378, %v1377
        %v1406 = vpack.c.b16 %v1380, %v1379
        %v1407 = vpack.c.b16 %v1382, %v1381
        %v1408 = vpack.c.b16 %v1384, %v1383
        %v1409 = vpack.c.b16 %v1386, %v1385
        %v1410 = vpack.c.b16 %v1388, %v1387
        %v1411 = vpack.c.b16 %v1390, %v1389
        %v1412 = vpack.c.b16 %v1392, %v1391
        %v1413 = vpack.c.b16 %v1394, %v1393
        %v1414 = vpack.c.b16 %v1396, %v1395
        %v1415 = vpack.c.b16 %v1398, %v1397
        %v1416 = vpack.c.b16 %v1400, %v1399
        %1433 = vmatpush.bf16.msra.mxu0 %v1408
        %1434 = vmatpush.bf16.msra.mxu0 %v1407
        %1435 = vmatpush.bf16.msra.mxu0 %v1406
        %1436 = vmatpush.bf16.msra.mxu0 %v1405
        %1437 = vmatpush.bf16.msra.mxu0 %v1404
        %1438 = vmatpush.bf16.msra.mxu0 %v1403
        %1439 = vmatpush.bf16.msra.mxu0 %v1402
        %1440 = vmatpush.bf16.msra.mxu0 %v1401
        %1441 = vmatmul.bf16.gmra.mxu0 %v618
        %v1442 = vpop.f32.mrf.mxu0
        %v1443 = vadd.f32 0.0, %v1442
        %v1444 = vpop.f32.mrf.mxu0
        %1445 = vdwg.mxu0
        %1446 = vmatpush.bf16.msra.mxu0 %v1416
        %1447 = vmatpush.bf16.msra.mxu0 %v1415
        %1448 = vmatpush.bf16.msra.mxu0 %v1414
        %1449 = vmatpush.bf16.msra.mxu0 %v1413
        %1450 = vmatpush.bf16.msra.mxu0 %v1412
        %1451 = vmatpush.bf16.msra.mxu0 %v1411
        %1452 = vmatpush.bf16.msra.mxu0 %v1410
        %1453 = vmatpush.bf16.msra.mxu0 %v1409
        %1454 = vmatmul.bf16.gmra.mxu0 %v619
        %v1455 = vpop.f32.mrf.mxu0
        %v1456 = vadd.f32 %v1443, %v1455
        %v1457 = vpop.f32.mrf.mxu0
        %1458 = vdwg.mxu0
        %s1459 = scalar_lea.vmem %s9, 16
        %v1460 = vld [vmem:[%s1459] sm:$0xf]
        %v1461 = vld [vmem:[%s1459 + $0x4] sm:$0xf]
        %v1462 = vpack.c.bf16 %v1456, %v1456
        %s1463 = scalar_lea.vmem %s10, 32
        %v1464 = vld [vmem:[%s1463] sm:$0xff]
        %v1465 = vld [vmem:[%s1463 + $0x8] sm:$0xff]
        %1467 = vset.pattern.permute.xlu0 0
        %1468 = vperm.xlu0 %1467, %v1464
        %v1469 = vpop.permute.xlu0 %1468
        %1472 = vset.pattern.permute.xlu0 0
        %1473 = vperm.xlu0 %1472, %v1465
        %v1474 = vpop.permute.xlu0 %1473
        %v1478 = vunpack.c.l.b16 %v1460
        %v1479 = vunpack.c.l.b16 %v1461
        %v1480 = vpack.c.b16 %v1479, %v1478
        %v1482 = vsel %vm855, %v1480, 0
        %v1485 = vsel %vm859, %v1462, 0
        %1487 = vmatpush.bf16.msra.mxu0 0
        %1488 = vmatpush.bf16.msra.mxu0 0
        %1489 = vmatpush.bf16.msra.mxu0 0
        %1490 = vmatpush.bf16.msra.mxu0 0
        %1491 = vmatpush.bf16.msra.mxu0 0
        %1492 = vmatpush.bf16.msra.mxu0 0
        %1493 = vmatpush.bf16.msra.mxu0 0
        %1494 = vmatpush.bf16.msra.mxu0 %v1485
        %1495 = vmatmul.bf16.gmra.mxu0 %v1482
        %v1496 = vpop.f32.mrf.mxu0
        %v1497 = vadd.f32 %v1469, %v1496
        %v1498 = vpop.f32.mrf.mxu0
        %v1499 = vadd.f32 %v1474, %v1498
        %1500 = vdwg.mxu0
        %v1501 = vmax.f32 %v1497, 0.0
        %v1502 = vmax.f32 %v1499, 0.0
        %v1503 = vpack.c.bf16 %v1502, %v1501
        %v1504 = vld [vmem:[%s527] sm:$0xf]
        %v1505 = vld [vmem:[%s527 + $0x4] sm:$0xf]
        %v1508 = vunpack.c.l.b16 %v1504
        %v1509 = vunpack.c.l.b16 %v1505
        %v1510 = vpack.c.b16 %v1509, %v1508
        %vm1512 = vcmask 130048
        %v1514 = vsel %vm1512, %v1503, 0
        %1516 = vmatpush.bf16.msra.mxu0 0
        %1517 = vmatpush.bf16.msra.mxu0 0
        %1518 = vmatpush.bf16.msra.mxu0 0
        %1519 = vmatpush.bf16.msra.mxu0 0
        %1520 = vmatpush.bf16.msra.mxu0 0
        %1521 = vmatpush.bf16.msra.mxu0 0
        %1522 = vmatpush.bf16.msra.mxu0 0
        %1523 = vmatpush.bf16.msra.mxu0 %v1510
        %1524 = vmatmul.bf16.gmra.mxu0 %v1514
        %v1525 = vpop.f32.mrf.mxu0
        %v1526 = vadd.f32 0.0, %v1525
        %v1527 = vpop.f32.mrf.mxu0
        %v1528 = vadd.f32 0.0, %v1527
        %1529 = vdwg.mxu0
        %v1530 = vadd.f32 %v1301, %v1526
        %v1531 = vadd.f32 %v1303, %v1528
        %v1532 = vld [vmem:[%s4] sm:$0xf]
        %v1533 = vld [vmem:[%s4 + $0x4] sm:$0xf]
        %v1534 = vld [vmem:[%s4 + $0x8] sm:$0xf]
        %v1535 = vld [vmem:[%s4 + $0xc] sm:$0xf]
        %v1536 = vld [vmem:[%s4 + $0x10] sm:$0xf]
        %v1537 = vld [vmem:[%s4 + $0x14] sm:$0xf]
        %v1538 = vld [vmem:[%s4 + $0x18] sm:$0xf]
        %v1539 = vld [vmem:[%s4 + $0x1c] sm:$0xf]
        %v1540 = vld [vmem:[%s4 + $0x20] sm:$0xf]
        %v1541 = vld [vmem:[%s4 + $0x24] sm:$0xf]
        %v1542 = vld [vmem:[%s4 + $0x28] sm:$0xf]
        %v1543 = vld [vmem:[%s4 + $0x2c] sm:$0xf]
        %v1544 = vld [vmem:[%s4 + $0x30] sm:$0xf]
        %v1545 = vld [vmem:[%s4 + $0x34] sm:$0xf]
        %v1546 = vld [vmem:[%s4 + $0x38] sm:$0xf]
        %v1547 = vld [vmem:[%s4 + $0x3c] sm:$0xf]
        %v1548 = vld [vmem:[%s4 + $0x40] sm:$0xf]
        %v1549 = vld [vmem:[%s4 + $0x44] sm:$0xf]
        %v1550 = vld [vmem:[%s4 + $0x48] sm:$0xf]
        %v1551 = vld [vmem:[%s4 + $0x4c] sm:$0xf]
        %v1552 = vld [vmem:[%s4 + $0x50] sm:$0xf]
        %v1553 = vld [vmem:[%s4 + $0x54] sm:$0xf]
        %v1554 = vld [vmem:[%s4 + $0x58] sm:$0xf]
        %v1555 = vld [vmem:[%s4 + $0x5c] sm:$0xf]
        %v1556 = vld [vmem:[%s4 + $0x60] sm:$0xf]
        %v1557 = vld [vmem:[%s4 + $0x64] sm:$0xf]
        %v1558 = vld [vmem:[%s4 + $0x68] sm:$0xf]
        %v1559 = vld [vmem:[%s4 + $0x6c] sm:$0xf]
        %v1560 = vld [vmem:[%s4 + $0x70] sm:$0xf]
        %v1561 = vld [vmem:[%s4 + $0x74] sm:$0xf]
        %v1562 = vld [vmem:[%s4 + $0x78] sm:$0xf]
        %v1563 = vld [vmem:[%s4 + $0x7c] sm:$0xf]
        %v1596 = vunpack.c.l.b16 %v1532
        %v1597 = vunpack.c.l.b16 %v1533
        %v1598 = vunpack.c.l.b16 %v1534
        %v1599 = vunpack.c.l.b16 %v1535
        %v1600 = vunpack.c.l.b16 %v1536
        %v1601 = vunpack.c.l.b16 %v1537
        %v1602 = vunpack.c.l.b16 %v1538
        %v1603 = vunpack.c.l.b16 %v1539
        %v1604 = vunpack.c.l.b16 %v1540
        %v1605 = vunpack.c.l.b16 %v1541
        %v1606 = vunpack.c.l.b16 %v1542
        %v1607 = vunpack.c.l.b16 %v1543
        %v1608 = vunpack.c.l.b16 %v1544
        %v1609 = vunpack.c.l.b16 %v1545
        %v1610 = vunpack.c.l.b16 %v1546
        %v1611 = vunpack.c.l.b16 %v1547
        %v1612 = vunpack.c.l.b16 %v1548
        %v1613 = vunpack.c.l.b16 %v1549
        %v1614 = vunpack.c.l.b16 %v1550
        %v1615 = vunpack.c.l.b16 %v1551
        %v1616 = vunpack.c.l.b16 %v1552
        %v1617 = vunpack.c.l.b16 %v1553
        %v1618 = vunpack.c.l.b16 %v1554
        %v1619 = vunpack.c.l.b16 %v1555
        %v1620 = vunpack.c.l.b16 %v1556
        %v1621 = vunpack.c.l.b16 %v1557
        %v1622 = vunpack.c.l.b16 %v1558
        %v1623 = vunpack.c.l.b16 %v1559
        %v1624 = vunpack.c.l.b16 %v1560
        %v1625 = vunpack.c.l.b16 %v1561
        %v1626 = vunpack.c.l.b16 %v1562
        %v1627 = vunpack.c.l.b16 %v1563
        %v1628 = vpack.c.b16 %v1597, %v1596
        %v1629 = vpack.c.b16 %v1599, %v1598
        %v1630 = vpack.c.b16 %v1601, %v1600
        %v1631 = vpack.c.b16 %v1603, %v1602
        %v1632 = vpack.c.b16 %v1605, %v1604
        %v1633 = vpack.c.b16 %v1607, %v1606
        %v1634 = vpack.c.b16 %v1609, %v1608
        %v1635 = vpack.c.b16 %v1611, %v1610
        %v1636 = vpack.c.b16 %v1613, %v1612
        %v1637 = vpack.c.b16 %v1615, %v1614
        %v1638 = vpack.c.b16 %v1617, %v1616
        %v1639 = vpack.c.b16 %v1619, %v1618
        %v1640 = vpack.c.b16 %v1621, %v1620
        %v1641 = vpack.c.b16 %v1623, %v1622
        %v1642 = vpack.c.b16 %v1625, %v1624
        %v1643 = vpack.c.b16 %v1627, %v1626
        %1660 = vmatpush.bf16.msra.mxu0 %v1635
        %1661 = vmatpush.bf16.msra.mxu0 %v1634
        %1662 = vmatpush.bf16.msra.mxu0 %v1633
        %1663 = vmatpush.bf16.msra.mxu0 %v1632
        %1664 = vmatpush.bf16.msra.mxu0 %v1631
        %1665 = vmatpush.bf16.msra.mxu0 %v1630
        %1666 = vmatpush.bf16.msra.mxu0 %v1629
        %1667 = vmatpush.bf16.msra.mxu0 %v1628
        %1668 = vmatmul.bf16.gmra.mxu0 %v618
        %v1669 = vpop.f32.mrf.mxu0
        %v1670 = vadd.f32 0.0, %v1669
        %v1671 = vpop.f32.mrf.mxu0
        %1672 = vdwg.mxu0
        %1673 = vmatpush.bf16.msra.mxu0 %v1643
        %1674 = vmatpush.bf16.msra.mxu0 %v1642
        %1675 = vmatpush.bf16.msra.mxu0 %v1641
        %1676 = vmatpush.bf16.msra.mxu0 %v1640
        %1677 = vmatpush.bf16.msra.mxu0 %v1639
        %1678 = vmatpush.bf16.msra.mxu0 %v1638
        %1679 = vmatpush.bf16.msra.mxu0 %v1637
        %1680 = vmatpush.bf16.msra.mxu0 %v1636
        %1681 = vmatmul.bf16.gmra.mxu0 %v619
        %v1682 = vpop.f32.mrf.mxu0
        %v1683 = vadd.f32 %v1670, %v1682
        %v1684 = vpop.f32.mrf.mxu0
        %1685 = vdwg.mxu0
        %s1686 = scalar_lea.vmem %s9, 24
        %v1687 = vld [vmem:[%s1686] sm:$0xf]
        %v1688 = vld [vmem:[%s1686 + $0x4] sm:$0xf]
        %v1689 = vpack.c.bf16 %v1683, %v1683
        %s1690 = scalar_lea.vmem %s10, 48
        %v1691 = vld [vmem:[%s1690] sm:$0xff]
        %v1692 = vld [vmem:[%s1690 + $0x8] sm:$0xff]
        %1694 = vset.pattern.permute.xlu0 0
        %1695 = vperm.xlu0 %1694, %v1691
        %v1696 = vpop.permute.xlu0 %1695
        %1699 = vset.pattern.permute.xlu0 0
        %1700 = vperm.xlu0 %1699, %v1692
        %v1701 = vpop.permute.xlu0 %1700
        %v1705 = vunpack.c.l.b16 %v1687
        %v1706 = vunpack.c.l.b16 %v1688
        %v1707 = vpack.c.b16 %v1706, %v1705
        %v1709 = vsel %vm855, %v1707, 0
        %v1712 = vsel %vm859, %v1689, 0
        %1714 = vmatpush.bf16.msra.mxu0 0
        %1715 = vmatpush.bf16.msra.mxu0 0
        %1716 = vmatpush.bf16.msra.mxu0 0
        %1717 = vmatpush.bf16.msra.mxu0 0
        %1718 = vmatpush.bf16.msra.mxu0 0
        %1719 = vmatpush.bf16.msra.mxu0 0
        %1720 = vmatpush.bf16.msra.mxu0 0
        %1721 = vmatpush.bf16.msra.mxu0 %v1712
        %1722 = vmatmul.bf16.gmra.mxu0 %v1709
        %v1723 = vpop.f32.mrf.mxu0
        %v1724 = vadd.f32 %v1696, %v1723
        %v1725 = vpop.f32.mrf.mxu0
        %v1726 = vadd.f32 %v1701, %v1725
        %1727 = vdwg.mxu0
        %v1728 = vmax.f32 %v1724, 0.0
        %v1729 = vmax.f32 %v1726, 0.0
        %v1730 = vpack.c.bf16 %v1729, %v1728
        %v1731 = vld [vmem:[%s580] sm:$0xf]
        %v1733 = vsel %vm855, %v1730, 0
        %v1736 = vsel %vm859, %v1731, 0
        %1738 = vmatpush.bf16.msra.mxu0 0
        %1739 = vmatpush.bf16.msra.mxu0 0
        %1740 = vmatpush.bf16.msra.mxu0 0
        %1741 = vmatpush.bf16.msra.mxu0 0
        %1742 = vmatpush.bf16.msra.mxu0 0
        %1743 = vmatpush.bf16.msra.mxu0 0
        %1744 = vmatpush.bf16.msra.mxu0 0
        %1745 = vmatpush.bf16.msra.mxu0 %v1736
        %1746 = vmatmul.bf16.gmra.mxu0 %v1733
        %v1747 = vpop.f32.mrf.mxu0
        %v1748 = vadd.f32 0.0, %v1747
        %v1749 = vpop.f32.mrf.mxu0
        %v1750 = vadd.f32 0.0, %v1749
        %1751 = vdwg.mxu0
        %v1752 = vadd.f32 %v1530, %v1748
        %v1753 = vadd.f32 %v1531, %v1750
        %1754 = vst [vmem:[%s576] sm:$0xff] %v1752
        %1755 = vst [vmem:[%s576 + $0x8] sm:$0xff] %v1753
        %s1756 = sand.u32 %s287, 1
        %s1757 = scalar_lea.sflag [#allocation4], %s1756
        %s1758 = sand.u32 %s287, 1
        %s1759 = smul.addr %s1758, 16
        %s1760 = scalar_lea.vmem [#allocation7], %s1759
        // Predicated region
        $region151: #{tpu_custom_call.1} parent=137 // pred_check
          %p1761 = pneg %p297
        $region152: #{tpu_custom_call.1} parent=137 // pred_check_branch
          %1763 = sbr.rel (%p1761) target = $region154
        $region153: #{tpu_custom_call.1} parent=137 // pred_region
          %1765 = vsyncadd %s1757, 0
          %s1766 = smul.addr %s28, 8
          %s1767 = scalar_lea.hbm %s11, %s1766
          %s1768 = sshll.u32 %s1760, 4
          %s1769 = int_to_ptr.vmem [resolvable:$true] %s1768
          %s1770 = sshll.u32 %s1767, 4
          %s1771 = int_to_ptr.hbm [resolvable:$true] %s1770
          %1776 = dma.vmem_to_hbm [thread:$0]  %s1769, 256, %s1771, %s1757, 128, 256, 8
        $region154: #{tpu_custom_call.1} parent=137 // pred_fallthru
          _
      $region138: #{tpu_custom_call.1} parent=5 // pred_fallthru
        _
      %p1777 = scmp.le.s32.totalorder 2, %s23
      // Predicated region
      $region155: #{tpu_custom_call.1} parent=5 // pred_check
        %p1778 = pneg %p1777
      $region156: #{tpu_custom_call.1} parent=5 // pred_check_branch
        %1780 = sbr.rel (%p1778) target = $region158
      $region157: #{tpu_custom_call.1} parent=5 // pred_region
        %s1781 = ssub.s32 %s23, 2
        // Predicated region
        $region159: #{tpu_custom_call.1} parent=157 // pred_check
          %p1782 = pneg %p303
        $region160: #{tpu_custom_call.1} parent=157 // pred_check_branch
          %1784 = sbr.rel (%p1782) target = $region162
        $region161: #{tpu_custom_call.1} parent=157 // pred_region
          %s1785 = sand.u32 %s288, 1
          %s1786 = scalar_lea.sflag [#allocation4], %s1785
          %s1787 = sand.u32 %s288, 1
          %s1788 = smul.addr %s1787, 16
          %s1789 = scalar_lea.vmem [#allocation7], %s1788
          %1791 = dma.done %s1786, 256
        $region162: #{tpu_custom_call.1} parent=157 // pred_fallthru
          _
      $region158: #{tpu_custom_call.1} parent=5 // pred_fallthru
        _
    $region6: #{tpu_custom_call.1} parent=1 // loop_footer
      %s27 = sadd.s32 1, %s23
    $region7: #{tpu_custom_call.1} parent=1 // loop_footer_branch
      %22 = sbr.rel target = $region3
    $region8: #{tpu_custom_call.1} parent=1 // loop_exit
      _
    %1792 = vsyncpa [#allocation3], 1
    %s1793 = scalar_lea.sflag [#allocation3], 1
    %1794 = vsyncpa %s1793, 1
    %1795 = vsyncpa [#allocation4], 1
    %s1796 = scalar_lea.sflag [#allocation4], 1
    %1797 = vsyncpa %s1796, 1

</llo_original>
